<compile_context>
chip_gen: v7x
topology: tpu7x:2x2x1
jax: 0.10.0
libtpu: 0.0.40
codegen_flags: <defaults>
</compile_context>

<pallas_src>
import functools

import jax
import jax.numpy as jnp
from jax import lax
from jax.experimental import pallas as pl
from jax.experimental.pallas import tpu as pltpu


def _mf_kernel(idx_ref, ut_ref, it_ref, out_ref, ue_ref, ie_ref):
    """One batch tile of TB elements; outputs in final (row-major) layout.

    idx_ref : (TB, 2)   int32    [:, 0] = user ids, [:, 1] = item ids
    ut_ref  : (NUp, K)  float32  row-padded user table (full, VMEM-resident)
    it_ref  : (NIp, K)  float32  row-padded item table (full, VMEM-resident)
    out_ref : (TB, 1)   float32  per-row dot products
    ue_ref  : (TB, K)   float32  gathered user embeddings
    ie_ref  : (TB, K)   float32  gathered item embeddings
    """
    idx = idx_ref[...]                          # (TB, 2) int32
    tb = idx.shape[0]
    nu = ut_ref.shape[0]
    ni = it_ref.shape[0]

    u_idx = idx[:, 0:1]                         # (TB, 1)
    i_idx = idx[:, 1:2]                         # (TB, 1)

    # One-hot gather via MXU (tables are small enough to live in VMEM).
    # Precision.HIGHEST keeps the gather numerically exact (one-hot rows).
    oh_u = (lax.broadcasted_iota(jnp.int32, (tb, nu), 1) == u_idx).astype(jnp.float32)
    oh_i = (lax.broadcasted_iota(jnp.int32, (tb, ni), 1) == i_idx).astype(jnp.float32)

    ue = jnp.dot(oh_u, ut_ref[...],
                 precision=lax.Precision.HIGHEST,
                 preferred_element_type=jnp.float32)        # (TB, K)
    ie = jnp.dot(oh_i, it_ref[...],
                 precision=lax.Precision.HIGHEST,
                 preferred_element_type=jnp.float32)        # (TB, K)

    ue_ref[...] = ue
    ie_ref[...] = ie
    # VPU elementwise multiply + cross-lane (K-axis) reduction on the XLU.
    out_ref[...] = jnp.sum(ue * ie, axis=1, keepdims=True)  # (TB, 1)


def _round_up(n, m):
    return ((n + m - 1) // m) * m


def _pad_rows(table, mult=128):
    """Zero-pad table rows to a multiple of `mult` (clean MXU contraction dim)."""
    n = table.shape[0]
    n_pad = _round_up(n, mult)
    if n_pad != n:
        table = jnp.pad(table, ((0, n_pad - n), (0, 0)))
    return table.astype(jnp.float32)


@functools.partial(jax.jit, static_argnames=("block_b",))
def mf_forward(x, user_table, item_table, *, block_b=256):
    """Pallas implementation of MF.forward.

    Args:
      x:          (B, 2) int, [:, 0] = user index, [:, 1] = item index
      user_table: (num_users, K) float32
      item_table: (num_items, K) float32
      block_b:    batch tile size (rounded up to a multiple of 128)
    Returns:
      (out (B, 1), user_embed (B, K), item_embed (B, K))
    """
    B = x.shape[0]
    K = user_table.shape[1]
    assert item_table.shape[1] == K

    # Batch tiling: TB multiple of 128, no larger than needed.
    tb = _round_up(min(block_b, B), 128)
    nb = pl.cdiv(B, tb)
    b_pad = nb * tb

    # Indices: row-pad only (padded rows use index 0, always valid, sliced off).
    idx = x.astype(jnp.int32)
    if b_pad != B:
        idx = jnp.pad(idx, ((0, b_pad - B), (0, 0)))         # (B_pad, 2)

    # Tables: zero-pad rows to multiples of 128.
    # TODO(synk): for tables too large for VMEM, switch to memory_space=pl.ANY
    # plus manually double-buffered pltpu.make_async_copy row gathers.
    ut = _pad_rows(user_table)                               # (NUp, K)
    it = _pad_rows(item_table)                               # (NIp, K)

    grid_spec = pltpu.PrefetchScalarGridSpec(
        num_scalar_prefetch=0,
        grid=(nb,),
        in_specs=[
            pl.BlockSpec((tb, 2), lambda i: (i, 0)),          # index tile
            pl.BlockSpec(ut.shape, lambda i: (0, 0)),         # full user table (resident)
            pl.BlockSpec(it.shape, lambda i: (0, 0)),         # full item table (resident)
        ],
        out_specs=[
            pl.BlockSpec((tb, 1), lambda i: (i, 0)),          # dots   (final layout)
            pl.BlockSpec((tb, K), lambda i: (i, 0)),          # user embeds (final layout)
            pl.BlockSpec((tb, K), lambda i: (i, 0)),          # item embeds (final layout)
        ],
    )

    out_shapes = (
        jax.ShapeDtypeStruct((b_pad, 1), jnp.float32),
        jax.ShapeDtypeStruct((b_pad, K), jnp.float32),
        jax.ShapeDtypeStruct((b_pad, K), jnp.float32),
    )

    out_p, ue_p, ie_p = pl.pallas_call(
        _mf_kernel,
        out_shape=out_shapes,
        grid_spec=grid_spec,
        compiler_params=pltpu.CompilerParams(
            # Blocks are fully independent -> shard across v7x's two TensorCores.
            dimension_semantics=("parallel",),
        ),
    )(idx, ut, it)

    # Only a slice back to the logical batch; no transposes, no extra HBM pass.
    return out_p[:B], ue_p[:B], ie_p[:B]


if __name__ == "__main__":
    # Small deterministic setup consistent with MF.__init__.
    num_users, num_items, embedding_k = 10, 12, 32
    batch = 8

    key = jax.random.PRNGKey(0)
    k_u, k_i, k_uid, k_iid = jax.random.split(key, 4)

    user_table = jax.random.normal(k_u, (num_users, embedding_k), dtype=jnp.float32)
    item_table = jax.random.normal(k_i, (num_items, embedding_k), dtype=jnp.float32)

    user_idx = jax.random.randint(k_uid, (batch,), 0, num_users, dtype=jnp.int32)
    item_idx = jax.random.randint(k_iid, (batch,), 0, num_items, dtype=jnp.int32)
    x = jnp.stack([user_idx, item_idx], axis=1)               # (B, 2) int32

    out, user_embed, item_embed = mf_forward(x, user_table, item_table)
    jax.block_until_ready((out, user_embed, item_embed))

    # Pure-JAX reference.
    ue_ref = user_table[user_idx]
    ie_ref = item_table[item_idx]
    out_ref = jnp.sum(ue_ref * ie_ref, axis=1, keepdims=True)

    assert out.shape == (batch, 1)
    assert user_embed.shape == (batch, embedding_k)
    assert item_embed.shape == (batch, embedding_k)
    assert jnp.allclose(user_embed, ue_ref, atol=1e-5), "user_embed mismatch"
    assert jnp.allclose(item_embed, ie_ref, atol=1e-5), "item_embed mismatch"
    assert jnp.allclose(out, out_ref, atol=1e-4, rtol=1e-4), "dot-product mismatch"

    print("KERNEL_OK")
</pallas_src>

<mosaic_0001>
module attributes {stable_mosaic.version = 11 : i64} {
  func.func @_mf_kernel(%arg0: i32, %arg1: memref<128x2xi32, #tpu.memory_space<vmem>>, %arg2: memref<128x32xf32, #tpu.memory_space<vmem>>, %arg3: memref<128x32xf32, #tpu.memory_space<vmem>>, %arg4: memref<128x1xf32, #tpu.memory_space<vmem>>, %arg5: memref<128x32xf32, #tpu.memory_space<vmem>>, %arg6: memref<128x32xf32, #tpu.memory_space<vmem>>) attributes {dimension_semantics = [#tpu.dimension_semantics<parallel>], iteration_bounds = array<i64: 1>, scalar_prefetch = 0 : i64, scratch_operands = 0 : i64, tpu.core_type = #tpu.core_type<tc>, window_params = [{transform_indices = @transform_0, window_bounds = array<i64: 128, 2>}, {pipeline_mode = #tpu.pipeline_mode<synchronous>, transform_indices = @transform_1, window_bounds = array<i64: 128, 32>}, {pipeline_mode = #tpu.pipeline_mode<synchronous>, transform_indices = @transform_2, window_bounds = array<i64: 128, 32>}, {transform_indices = @transform_3, window_bounds = array<i64: 128, 1>}, {transform_indices = @transform_4, window_bounds = array<i64: 128, 32>}, {transform_indices = @transform_5, window_bounds = array<i64: 128, 32>}]} {
    %c0 = arith.constant 0 : index
    %c0_0 = arith.constant 0 : index
    %0 = vector.load %arg1[%c0, %c0_0] : memref<128x2xi32, #tpu.memory_space<vmem>>, vector<128x2xi32>
    %1 = vector.extract_strided_slice %0 {offsets = [0, 0], sizes = [128, 1], strides = [1, 1]} : vector<128x2xi32> to vector<128x1xi32>
    %2 = vector.extract_strided_slice %0 {offsets = [0, 1], sizes = [128, 1], strides = [1, 1]} : vector<128x2xi32> to vector<128x1xi32>
    %3 = tpu.iota {dimensions = array<i32: 1>} : vector<128x128xi32>
    %4 = vector.broadcast %1 : vector<128x1xi32> to vector<128x128xi32>
    %5 = arith.cmpi eq, %3, %4 : vector<128x128xi32>
    %6 = arith.extui %5 : vector<128x128xi1> to vector<128x128xi32>
    %7 = arith.sitofp %6 : vector<128x128xi32> to vector<128x128xf32>
    %8 = tpu.iota {dimensions = array<i32: 1>} : vector<128x128xi32>
    %9 = vector.broadcast %2 : vector<128x1xi32> to vector<128x128xi32>
    %10 = arith.cmpi eq, %8, %9 : vector<128x128xi32>
    %11 = arith.extui %10 : vector<128x128xi1> to vector<128x128xi32>
    %12 = arith.sitofp %11 : vector<128x128xi32> to vector<128x128xf32>
    %c0_1 = arith.constant 0 : index
    %c0_2 = arith.constant 0 : index
    %13 = vector.load %arg2[%c0_1, %c0_2] : memref<128x32xf32, #tpu.memory_space<vmem>>, vector<128x32xf32>
    %cst = arith.constant dense<0.000000e+00> : vector<128x32xf32>
    %14 = tpu.matmul %7, %13, %cst {dimension_numbers = #tpu.dot_dimension_numbers<[1], [0], [0], [1], [0, 0, 1, 1], [], []>, precision = #tpu.contract_precision<fp32>} : vector<128x128xf32>, vector<128x32xf32>, vector<128x32xf32> -> vector<128x32xf32>
    %c0_3 = arith.constant 0 : index
    %c0_4 = arith.constant 0 : index
    %15 = vector.load %arg3[%c0_3, %c0_4] : memref<128x32xf32, #tpu.memory_space<vmem>>, vector<128x32xf32>
    %cst_5 = arith.constant dense<0.000000e+00> : vector<128x32xf32>
    %16 = tpu.matmul %12, %15, %cst_5 {dimension_numbers = #tpu.dot_dimension_numbers<[1], [0], [0], [1], [0, 0, 1, 1], [], []>, precision = #tpu.contract_precision<fp32>} : vector<128x128xf32>, vector<128x32xf32>, vector<128x32xf32> -> vector<128x32xf32>
    %c0_6 = arith.constant 0 : index
    %c0_7 = arith.constant 0 : index
    %17 = vector.load %arg5[%c0_6, %c0_7] : memref<128x32xf32, #tpu.memory_space<vmem>>, vector<128x32xf32>
    tpu.vector_store %arg5[%c0_6, %c0_7], %14 {strides = array<i32>} : memref<128x32xf32, #tpu.memory_space<vmem>>, vector<128x32xf32>,
    %c0_8 = arith.constant 0 : index
    %c0_9 = arith.constant 0 : index
    %18 = vector.load %arg6[%c0_8, %c0_9] : memref<128x32xf32, #tpu.memory_space<vmem>>, vector<128x32xf32>
    tpu.vector_store %arg6[%c0_8, %c0_9], %16 {strides = array<i32>} : memref<128x32xf32, #tpu.memory_space<vmem>>, vector<128x32xf32>,
    %19 = arith.mulf %14, %16 : vector<128x32xf32>
    %cst_10 = arith.constant dense<0.000000e+00> : vector<128xf32>
    %20 = vector.multi_reduction <add>, %19, %cst_10 [1] : vector<128x32xf32> to vector<128xf32>
    %21 = vector.shape_cast %20 : vector<128xf32> to vector<128x1xf32>
    %c0_11 = arith.constant 0 : index
    %c0_12 = arith.constant 0 : index
    %22 = vector.load %arg4[%c0_11, %c0_12] : memref<128x1xf32, #tpu.memory_space<vmem>>, vector<128x1xf32>
    tpu.vector_store %arg4[%c0_11, %c0_12], %21 {strides = array<i32>} : memref<128x1xf32, #tpu.memory_space<vmem>>, vector<128x1xf32>,
    return
  }
  func.func @transform_0(%arg0: i32) -> (i32, i32) {
    %c0_i32 = arith.constant 0 : i32
    %c0_i32_0 = arith.constant 0 : i32
    return %arg0, %c0_i32 : i32, i32
  }
  func.func @transform_1(%arg0: i32) -> (i32, i32) {
    %c0_i32 = arith.constant 0 : i32
    %c0_i32_0 = arith.constant 0 : i32
    %c0_i32_1 = arith.constant 0 : i32
    return %c0_i32, %c0_i32_0 : i32, i32
  }
  func.func @transform_2(%arg0: i32) -> (i32, i32) {
    %c0_i32 = arith.constant 0 : i32
    %c0_i32_0 = arith.constant 0 : i32
    %c0_i32_1 = arith.constant 0 : i32
    return %c0_i32, %c0_i32_0 : i32, i32
  }
  func.func @transform_3(%arg0: i32) -> (i32, i32) {
    %c0_i32 = arith.constant 0 : i32
    %c0_i32_0 = arith.constant 0 : i32
    return %arg0, %c0_i32 : i32, i32
  }
  func.func @transform_4(%arg0: i32) -> (i32, i32) {
    %c0_i32 = arith.constant 0 : i32
    %c0_i32_0 = arith.constant 0 : i32
    return %arg0, %c0_i32 : i32, i32
  }
  func.func @transform_5(%arg0: i32) -> (i32, i32) {
    %c0_i32 = arith.constant 0 : i32
    %c0_i32_0 = arith.constant 0 : i32
    return %arg0, %c0_i32 : i32, i32
  }
}

</mosaic_0001>

<llo_original>
// kernel: mf_forward.1
$region0: #{mf_forward.1}
  #allocation0 [shape = 'u32[]', space=smem, size = 0x4, offset = 0x4, fixed_abs, tag = 'smem constant byte address 0x4 - core index']
  #allocation1 [shape = 'u32[144,128]{1,0:T(1,128)}', space=vmem, size = 0x12000, scoped, tag = 'internal scratch']
  %s0 = inlined_call_operand.vmem [shape: s32[128,2], index: 0, kind: input, shape index: {}]
  %s1 = inlined_call_operand.vmem [shape: f32[128,32], index: 1, kind: input, shape index: {}]
  %s2 = inlined_call_operand.vmem [shape: f32[128,32], index: 2, kind: input, shape index: {}]
  %s3 = inlined_call_operand.vmem [shape: f32[128,1], index: 3, kind: output, shape index: {0}]
  %s4 = inlined_call_operand.vmem [shape: f32[128,32], index: 4, kind: output, shape index: {1}]
  %s5 = inlined_call_operand.vmem [shape: f32[128,32], index: 5, kind: output, shape index: {2}]
  %6 = xla_tuple %s3, %s4, %s5
  %s7 = sld [smem:[#allocation0]]
  $region38: #{mf_forward.1} parent=0
    _
  %s9 = ssub.s32 1, %s7
  %s10 = scalar_select 0, %s9, %s7
  // Predicated region
  $region2: #{mf_forward.1} parent=0 // pred_check
    _
  $region3: #{mf_forward.1} parent=0 // pred_check_branch
    %12 = sbr.rel (0) target = $region5
  $region4: #{mf_forward.1} parent=0 // pred_region
    _
  $region5: #{mf_forward.1} parent=0 // pred_fallthru
    _
  // Predicated region
  $region6: #{mf_forward.1} parent=0 // pred_check
    _
  $region7: #{mf_forward.1} parent=0 // pred_check_branch
    %14 = sbr.rel (0) target = $region9
  $region8: #{mf_forward.1} parent=0 // pred_region
    _
  $region9: #{mf_forward.1} parent=0 // pred_fallthru
    _
  // Predicated region
  $region10: #{mf_forward.1} parent=0 // pred_check
    _
  $region11: #{mf_forward.1} parent=0 // pred_check_branch
    %16 = sbr.rel (0) target = $region13
  $region12: #{mf_forward.1} parent=0 // pred_region
    _
  $region13: #{mf_forward.1} parent=0 // pred_fallthru
    _
  %v17 = vld [vmem:[%s0] sm:$0xff]
  %v18 = vld [vmem:[%s0 + $0x8] sm:$0xff]
  %v19 = vld [vmem:[%s0 + $0x10] sm:$0xff]
  %v20 = vld [vmem:[%s0 + $0x18] sm:$0xff]
  %v21 = vld [vmem:[%s0 + $0x20] sm:$0xff]
  %v22 = vld [vmem:[%s0 + $0x28] sm:$0xff]
  %v23 = vld [vmem:[%s0 + $0x30] sm:$0xff]
  %v24 = vld [vmem:[%s0 + $0x38] sm:$0xff]
  %v25 = vld [vmem:[%s0 + $0x40] sm:$0xff]
  %v26 = vld [vmem:[%s0 + $0x48] sm:$0xff]
  %v27 = vld [vmem:[%s0 + $0x50] sm:$0xff]
  %v28 = vld [vmem:[%s0 + $0x58] sm:$0xff]
  %v29 = vld [vmem:[%s0 + $0x60] sm:$0xff]
  %v30 = vld [vmem:[%s0 + $0x68] sm:$0xff]
  %v31 = vld [vmem:[%s0 + $0x70] sm:$0xff]
  %v32 = vld [vmem:[%s0 + $0x78] sm:$0xff]
  %v33 = vlaneseq
  %v34 = vand.u32 %v33, 127
  %35 = vset.pattern.permute.xlu0 0
  %36 = vperm.xlu0 %35, %v17
  %v37 = vpop.permute.xlu0 %36
  %38 = vset.pattern.permute.xlu0 0
  %39 = vperm.xlu0 %38, %v18
  %v40 = vpop.permute.xlu0 %39
  %41 = vset.pattern.permute.xlu0 0
  %42 = vperm.xlu0 %41, %v19
  %v43 = vpop.permute.xlu0 %42
  %44 = vset.pattern.permute.xlu0 0
  %45 = vperm.xlu0 %44, %v20
  %v46 = vpop.permute.xlu0 %45
  %47 = vset.pattern.permute.xlu0 0
  %48 = vperm.xlu0 %47, %v21
  %v49 = vpop.permute.xlu0 %48
  %50 = vset.pattern.permute.xlu0 0
  %51 = vperm.xlu0 %50, %v22
  %v52 = vpop.permute.xlu0 %51
  %53 = vset.pattern.permute.xlu0 0
  %54 = vperm.xlu0 %53, %v23
  %v55 = vpop.permute.xlu0 %54
  %56 = vset.pattern.permute.xlu0 0
  %57 = vperm.xlu0 %56, %v24
  %v58 = vpop.permute.xlu0 %57
  %59 = vset.pattern.permute.xlu0 0
  %60 = vperm.xlu0 %59, %v25
  %v61 = vpop.permute.xlu0 %60
  %62 = vset.pattern.permute.xlu0 0
  %63 = vperm.xlu0 %62, %v26
  %v64 = vpop.permute.xlu0 %63
  %65 = vset.pattern.permute.xlu0 0
  %66 = vperm.xlu0 %65, %v27
  %v67 = vpop.permute.xlu0 %66
  %68 = vset.pattern.permute.xlu0 0
  %69 = vperm.xlu0 %68, %v28
  %v70 = vpop.permute.xlu0 %69
  %71 = vset.pattern.permute.xlu0 0
  %72 = vperm.xlu0 %71, %v29
  %v73 = vpop.permute.xlu0 %72
  %74 = vset.pattern.permute.xlu0 0
  %75 = vperm.xlu0 %74, %v30
  %v76 = vpop.permute.xlu0 %75
  %77 = vset.pattern.permute.xlu0 0
  %78 = vperm.xlu0 %77, %v31
  %v79 = vpop.permute.xlu0 %78
  %80 = vset.pattern.permute.xlu0 0
  %81 = vperm.xlu0 %80, %v32
  %v82 = vpop.permute.xlu0 %81
  %vm83 = vcmp.eq.s32.totalorder %v34, %v37
  %vm84 = vcmp.eq.s32.totalorder %v34, %v40
  %vm85 = vcmp.eq.s32.totalorder %v34, %v43
  %vm86 = vcmp.eq.s32.totalorder %v34, %v46
  %vm87 = vcmp.eq.s32.totalorder %v34, %v49
  %vm88 = vcmp.eq.s32.totalorder %v34, %v52
  %vm89 = vcmp.eq.s32.totalorder %v34, %v55
  %vm90 = vcmp.eq.s32.totalorder %v34, %v58
  %vm91 = vcmp.eq.s32.totalorder %v34, %v61
  %vm92 = vcmp.eq.s32.totalorder %v34, %v64
  %vm93 = vcmp.eq.s32.totalorder %v34, %v67
  %vm94 = vcmp.eq.s32.totalorder %v34, %v70
  %vm95 = vcmp.eq.s32.totalorder %v34, %v73
  %vm96 = vcmp.eq.s32.totalorder %v34, %v76
  %vm97 = vcmp.eq.s32.totalorder %v34, %v79
  %vm98 = vcmp.eq.s32.totalorder %v34, %v82
  %v99 = vsel %vm83, 1, 0
  %v100 = vsel %vm84, 1, 0
  %v101 = vsel %vm85, 1, 0
  %v102 = vsel %vm86, 1, 0
  %v103 = vsel %vm87, 1, 0
  %v104 = vsel %vm88, 1, 0
  %v105 = vsel %vm89, 1, 0
  %v106 = vsel %vm90, 1, 0
  %v107 = vsel %vm91, 1, 0
  %v108 = vsel %vm92, 1, 0
  %v109 = vsel %vm93, 1, 0
  %v110 = vsel %vm94, 1, 0
  %v111 = vsel %vm95, 1, 0
  %v112 = vsel %vm96, 1, 0
  %v113 = vsel %vm97, 1, 0
  %v114 = vsel %vm98, 1, 0
  %v115 = vcvt.s32.f32 %v99
  %v116 = vcvt.s32.f32 %v100
  %v117 = vcvt.s32.f32 %v101
  %v118 = vcvt.s32.f32 %v102
  %v119 = vcvt.s32.f32 %v103
  %v120 = vcvt.s32.f32 %v104
  %v121 = vcvt.s32.f32 %v105
  %v122 = vcvt.s32.f32 %v106
  %v123 = vcvt.s32.f32 %v107
  %v124 = vcvt.s32.f32 %v108
  %v125 = vcvt.s32.f32 %v109
  %v126 = vcvt.s32.f32 %v110
  %v127 = vcvt.s32.f32 %v111
  %v128 = vcvt.s32.f32 %v112
  %v129 = vcvt.s32.f32 %v113
  %v130 = vcvt.s32.f32 %v114
  %131 = vset.pattern.permute.xlu0 1
  %132 = vperm.xlu0 %131, %v17
  %v133 = vpop.permute.xlu0 %132
  %134 = vset.pattern.permute.xlu0 1
  %135 = vperm.xlu0 %134, %v18
  %v136 = vpop.permute.xlu0 %135
  %137 = vset.pattern.permute.xlu0 1
  %138 = vperm.xlu0 %137, %v19
  %v139 = vpop.permute.xlu0 %138
  %140 = vset.pattern.permute.xlu0 1
  %141 = vperm.xlu0 %140, %v20
  %v142 = vpop.permute.xlu0 %141
  %143 = vset.pattern.permute.xlu0 1
  %144 = vperm.xlu0 %143, %v21
  %v145 = vpop.permute.xlu0 %144
  %146 = vset.pattern.permute.xlu0 1
  %147 = vperm.xlu0 %146, %v22
  %v148 = vpop.permute.xlu0 %147
  %149 = vset.pattern.permute.xlu0 1
  %150 = vperm.xlu0 %149, %v23
  %v151 = vpop.permute.xlu0 %150
  %152 = vset.pattern.permute.xlu0 1
  %153 = vperm.xlu0 %152, %v24
  %v154 = vpop.permute.xlu0 %153
  %155 = vset.pattern.permute.xlu0 1
  %156 = vperm.xlu0 %155, %v25
  %v157 = vpop.permute.xlu0 %156
  %158 = vset.pattern.permute.xlu0 1
  %159 = vperm.xlu0 %158, %v26
  %v160 = vpop.permute.xlu0 %159
  %161 = vset.pattern.permute.xlu0 1
  %162 = vperm.xlu0 %161, %v27
  %v163 = vpop.permute.xlu0 %162
  %164 = vset.pattern.permute.xlu0 1
  %165 = vperm.xlu0 %164, %v28
  %v166 = vpop.permute.xlu0 %165
  %167 = vset.pattern.permute.xlu0 1
  %168 = vperm.xlu0 %167, %v29
  %v169 = vpop.permute.xlu0 %168
  %170 = vset.pattern.permute.xlu0 1
  %171 = vperm.xlu0 %170, %v30
  %v172 = vpop.permute.xlu0 %171
  %173 = vset.pattern.permute.xlu0 1
  %174 = vperm.xlu0 %173, %v31
  %v175 = vpop.permute.xlu0 %174
  %176 = vset.pattern.permute.xlu0 1
  %177 = vperm.xlu0 %176, %v32
  %v178 = vpop.permute.xlu0 %177
  %vm179 = vcmp.eq.s32.totalorder %v34, %v133
  %vm180 = vcmp.eq.s32.totalorder %v34, %v136
  %vm181 = vcmp.eq.s32.totalorder %v34, %v139
  %vm182 = vcmp.eq.s32.totalorder %v34, %v142
  %vm183 = vcmp.eq.s32.totalorder %v34, %v145
  %vm184 = vcmp.eq.s32.totalorder %v34, %v148
  %vm185 = vcmp.eq.s32.totalorder %v34, %v151
  %vm186 = vcmp.eq.s32.totalorder %v34, %v154
  %vm187 = vcmp.eq.s32.totalorder %v34, %v157
  %vm188 = vcmp.eq.s32.totalorder %v34, %v160
  %vm189 = vcmp.eq.s32.totalorder %v34, %v163
  %vm190 = vcmp.eq.s32.totalorder %v34, %v166
  %vm191 = vcmp.eq.s32.totalorder %v34, %v169
  %vm192 = vcmp.eq.s32.totalorder %v34, %v172
  %vm193 = vcmp.eq.s32.totalorder %v34, %v175
  %vm194 = vcmp.eq.s32.totalorder %v34, %v178
  %v195 = vsel %vm179, 1, 0
  %v196 = vsel %vm180, 1, 0
  %v197 = vsel %vm181, 1, 0
  %v198 = vsel %vm182, 1, 0
  %v199 = vsel %vm183, 1, 0
  %v200 = vsel %vm184, 1, 0
  %v201 = vsel %vm185, 1, 0
  %v202 = vsel %vm186, 1, 0
  %v203 = vsel %vm187, 1, 0
  %v204 = vsel %vm188, 1, 0
  %v205 = vsel %vm189, 1, 0
  %v206 = vsel %vm190, 1, 0
  %v207 = vsel %vm191, 1, 0
  %v208 = vsel %vm192, 1, 0
  %v209 = vsel %vm193, 1, 0
  %v210 = vsel %vm194, 1, 0
  %v211 = vcvt.s32.f32 %v195
  %v212 = vcvt.s32.f32 %v196
  %v213 = vcvt.s32.f32 %v197
  %v214 = vcvt.s32.f32 %v198
  %v215 = vcvt.s32.f32 %v199
  %v216 = vcvt.s32.f32 %v200
  %v217 = vcvt.s32.f32 %v201
  %v218 = vcvt.s32.f32 %v202
  %v219 = vcvt.s32.f32 %v203
  %v220 = vcvt.s32.f32 %v204
  %v221 = vcvt.s32.f32 %v205
  %v222 = vcvt.s32.f32 %v206
  %v223 = vcvt.s32.f32 %v207
  %v224 = vcvt.s32.f32 %v208
  %v225 = vcvt.s32.f32 %v209
  %v226 = vcvt.s32.f32 %v210
  %v227 = vld [vmem:[%s1] sm:$0xff]
  %v228 = vld [vmem:[%s1 + $0x8] sm:$0xff]
  %v229 = vld [vmem:[%s1 + $0x10] sm:$0xff]
  %v230 = vld [vmem:[%s1 + $0x18] sm:$0xff]
  %v231 = vld [vmem:[%s1 + $0x20] sm:$0xff]
  %v232 = vld [vmem:[%s1 + $0x28] sm:$0xff]
  %v233 = vld [vmem:[%s1 + $0x30] sm:$0xff]
  %v234 = vld [vmem:[%s1 + $0x38] sm:$0xff]
  %v235 = vld [vmem:[%s1 + $0x40] sm:$0xff]
  %v236 = vld [vmem:[%s1 + $0x48] sm:$0xff]
  %v237 = vld [vmem:[%s1 + $0x50] sm:$0xff]
  %v238 = vld [vmem:[%s1 + $0x58] sm:$0xff]
  %v239 = vld [vmem:[%s1 + $0x60] sm:$0xff]
  %v240 = vld [vmem:[%s1 + $0x68] sm:$0xff]
  %v241 = vld [vmem:[%s1 + $0x70] sm:$0xff]
  %v242 = vld [vmem:[%s1 + $0x78] sm:$0xff]
  %243 = vmatprep.subr.mxu0 0.0
  %v244 = vand.u32 %v227, 4294901760
  %245 = vmatpush1.msra.mxu0 %v244
  %246 = vmatprep.subr.mxu0 0.0
  %v247 = vand.u32 %v228, 4294901760
  %248 = vmatpush1.msra.mxu0 %v247
  %249 = vmatprep.subr.mxu0 0.0
  %v250 = vand.u32 %v229, 4294901760
  %251 = vmatpush1.msra.mxu0 %v250
  %252 = vmatprep.subr.mxu0 0.0
  %v253 = vand.u32 %v230, 4294901760
  %254 = vmatpush1.msra.mxu0 %v253
  %255 = vmatprep.subr.mxu0 0.0
  %v256 = vand.u32 %v231, 4294901760
  %257 = vmatpush1.msra.mxu0 %v256
  %258 = vmatprep.subr.mxu0 0.0
  %v259 = vand.u32 %v232, 4294901760
  %260 = vmatpush1.msra.mxu0 %v259
  %261 = vmatprep.subr.mxu0 0.0
  %v262 = vand.u32 %v233, 4294901760
  %263 = vmatpush1.msra.mxu0 %v262
  %264 = vmatprep.subr.mxu0 0.0
  %v265 = vand.u32 %v234, 4294901760
  %266 = vmatpush1.msra.mxu0 %v265
  %267 = vmatprep.subr.mxu0 0.0
  %v268 = vand.u32 %v235, 4294901760
  %269 = vmatpush1.msra.mxu0 %v268
  %270 = vmatprep.subr.mxu0 0.0
  %v271 = vand.u32 %v236, 4294901760
  %272 = vmatpush1.msra.mxu0 %v271
  %273 = vmatprep.subr.mxu0 0.0
  %v274 = vand.u32 %v237, 4294901760
  %275 = vmatpush1.msra.mxu0 %v274
  %276 = vmatprep.subr.mxu0 0.0
  %v277 = vand.u32 %v238, 4294901760
  %278 = vmatpush1.msra.mxu0 %v277
  %279 = vmatprep.subr.mxu0 0.0
  %v280 = vand.u32 %v239, 4294901760
  %281 = vmatpush1.msra.mxu0 %v280
  %282 = vmatprep.subr.mxu0 0.0
  %v283 = vand.u32 %v240, 4294901760
  %284 = vmatpush1.msra.mxu0 %v283
  %285 = vmatprep.subr.mxu0 0.0
  %v286 = vand.u32 %v241, 4294901760
  %287 = vmatpush1.msra.mxu0 %v286
  %288 = vmatprep.subr.mxu0 0.0
  %v289 = vand.u32 %v242, 4294901760
  %290 = vmatpush1.msra.mxu0 %v289
  %291 = vmatprep.subr.mxu0 0.0
  %292 = vmatpush1.msra.mxu0 0.0
  %293 = vmatprep.subr.mxu0 0.0
  %294 = vmatpush1.msra.mxu0 0.0
  %295 = vmatprep.subr.mxu0 0.0
  %296 = vmatpush1.msra.mxu0 0.0
  %297 = vmatprep.subr.mxu0 0.0
  %298 = vmatpush1.msra.mxu0 0.0
  %299 = vmatprep.subr.mxu0 0.0
  %300 = vmatpush1.msra.mxu0 0.0
  %301 = vmatprep.subr.mxu0 0.0
  %302 = vmatpush1.msra.mxu0 0.0
  %303 = vmatprep.subr.mxu0 0.0
  %304 = vmatpush1.msra.mxu0 0.0
  %305 = vmatprep.subr.mxu0 0.0
  %306 = vmatpush1.msra.mxu0 0.0
  %307 = vmatprep.subr.mxu0 0.0
  %308 = vmatpush1.msra.mxu0 0.0
  %309 = vmatprep.subr.mxu0 0.0
  %310 = vmatpush1.msra.mxu0 0.0
  %311 = vmatprep.subr.mxu0 0.0
  %312 = vmatpush1.msra.mxu0 0.0
  %313 = vmatprep.subr.mxu0 0.0
  %314 = vmatpush1.msra.mxu0 0.0
  %315 = vmatprep.subr.mxu0 0.0
  %316 = vmatpush1.msra.mxu0 0.0
  %317 = vmatprep.subr.mxu0 0.0
  %318 = vmatpush1.msra.mxu0 0.0
  %319 = vmatprep.subr.mxu0 0.0
  %320 = vmatpush1.msra.mxu0 0.0
  %321 = vmatprep.subr.mxu0 0.0
  %322 = vmatpush1.msra.mxu0 0.0
  %323 = vmatprep.mubr.f32.mxu0 0.0
  %v324 = vand.u32 %v115, 4294901760
  %v325 = vsub.f32 %v115, %v324
  %v326 = vand.u32 %v325, 4294901760
  %v327 = vsub.f32 %v325, %v326
  %v328 = vand.u32 %v327, 4294901760
  %329 = vmatmul.mubr.f32.gmra.mrb[0].mxu0 %v328
  %v330 = vpop.f32.mrb[0].mxu0
  %v331 = vadd.f32 0.0, %v330
  %v332 = vpop.f32.mrb[0].mxu0
  %333 = vmatprep.mubr.f32.mxu0 0.0
  %v334 = vand.u32 %v116, 4294901760
  %v335 = vsub.f32 %v116, %v334
  %v336 = vand.u32 %v335, 4294901760
  %v337 = vsub.f32 %v335, %v336
  %v338 = vand.u32 %v337, 4294901760
  %339 = vmatmul.mubr.f32.gmra.mrb[0].mxu0 %v338
  %v340 = vpop.f32.mrb[0].mxu0
  %v341 = vadd.f32 0.0, %v340
  %v342 = vpop.f32.mrb[0].mxu0
  %343 = vmatprep.mubr.f32.mxu0 0.0
  %v344 = vand.u32 %v117, 4294901760
  %v345 = vsub.f32 %v117, %v344
  %v346 = vand.u32 %v345, 4294901760
  %v347 = vsub.f32 %v345, %v346
  %v348 = vand.u32 %v347, 4294901760
  %349 = vmatmul.mubr.f32.gmra.mrb[0].mxu0 %v348
  %v350 = vpop.f32.mrb[0].mxu0
  %v351 = vadd.f32 0.0, %v350
  %v352 = vpop.f32.mrb[0].mxu0
  %353 = vmatprep.mubr.f32.mxu0 0.0
  %v354 = vand.u32 %v118, 4294901760
  %v355 = vsub.f32 %v118, %v354
  %v356 = vand.u32 %v355, 4294901760
  %v357 = vsub.f32 %v355, %v356
  %v358 = vand.u32 %v357, 4294901760
  %359 = vmatmul.mubr.f32.gmra.mrb[0].mxu0 %v358
  %v360 = vpop.f32.mrb[0].mxu0
  %v361 = vadd.f32 0.0, %v360
  %v362 = vpop.f32.mrb[0].mxu0
  %363 = vmatprep.mubr.f32.mxu0 0.0
  %v364 = vand.u32 %v119, 4294901760
  %v365 = vsub.f32 %v119, %v364
  %v366 = vand.u32 %v365, 4294901760
  %v367 = vsub.f32 %v365, %v366
  %v368 = vand.u32 %v367, 4294901760
  %369 = vmatmul.mubr.f32.gmra.mrb[0].mxu0 %v368
  %v370 = vpop.f32.mrb[0].mxu0
  %v371 = vadd.f32 0.0, %v370
  %v372 = vpop.f32.mrb[0].mxu0
  %373 = vmatprep.mubr.f32.mxu0 0.0
  %v374 = vand.u32 %v120, 4294901760
  %v375 = vsub.f32 %v120, %v374
  %v376 = vand.u32 %v375, 4294901760
  %v377 = vsub.f32 %v375, %v376
  %v378 = vand.u32 %v377, 4294901760
  %379 = vmatmul.mubr.f32.gmra.mrb[0].mxu0 %v378
  %v380 = vpop.f32.mrb[0].mxu0
  %v381 = vadd.f32 0.0, %v380
  %v382 = vpop.f32.mrb[0].mxu0
  %383 = vmatprep.mubr.f32.mxu0 0.0
  %v384 = vand.u32 %v121, 4294901760
  %v385 = vsub.f32 %v121, %v384
  %v386 = vand.u32 %v385, 4294901760
  %v387 = vsub.f32 %v385, %v386
  %v388 = vand.u32 %v387, 4294901760
  %389 = vmatmul.mubr.f32.gmra.mrb[0].mxu0 %v388
  %v390 = vpop.f32.mrb[0].mxu0
  %v391 = vadd.f32 0.0, %v390
  %v392 = vpop.f32.mrb[0].mxu0
  %393 = vmatprep.mubr.f32.mxu0 0.0
  %v394 = vand.u32 %v122, 4294901760
  %v395 = vsub.f32 %v122, %v394
  %v396 = vand.u32 %v395, 4294901760
  %v397 = vsub.f32 %v395, %v396
  %v398 = vand.u32 %v397, 4294901760
  %399 = vmatmul.mubr.f32.gmra.mrb[0].mxu0 %v398
  %v400 = vpop.f32.mrb[0].mxu0
  %v401 = vadd.f32 0.0, %v400
  %v402 = vpop.f32.mrb[0].mxu0
  %403 = vmatprep.mubr.f32.mxu0 0.0
  %v404 = vand.u32 %v123, 4294901760
  %v405 = vsub.f32 %v123, %v404
  %v406 = vand.u32 %v405, 4294901760
  %v407 = vsub.f32 %v405, %v406
  %v408 = vand.u32 %v407, 4294901760
  %409 = vmatmul.mubr.f32.gmra.mrb[0].mxu0 %v408
  %v410 = vpop.f32.mrb[0].mxu0
  %v411 = vadd.f32 0.0, %v410
  %v412 = vpop.f32.mrb[0].mxu0
  %413 = vmatprep.mubr.f32.mxu0 0.0
  %v414 = vand.u32 %v124, 4294901760
  %v415 = vsub.f32 %v124, %v414
  %v416 = vand.u32 %v415, 4294901760
  %v417 = vsub.f32 %v415, %v416
  %v418 = vand.u32 %v417, 4294901760
  %419 = vmatmul.mubr.f32.gmra.mrb[0].mxu0 %v418
  %v420 = vpop.f32.mrb[0].mxu0
  %v421 = vadd.f32 0.0, %v420
  %v422 = vpop.f32.mrb[0].mxu0
  %423 = vmatprep.mubr.f32.mxu0 0.0
  %v424 = vand.u32 %v125, 4294901760
  %v425 = vsub.f32 %v125, %v424
  %v426 = vand.u32 %v425, 4294901760
  %v427 = vsub.f32 %v425, %v426
  %v428 = vand.u32 %v427, 4294901760
  %429 = vmatmul.mubr.f32.gmra.mrb[0].mxu0 %v428
  %v430 = vpop.f32.mrb[0].mxu0
  %v431 = vadd.f32 0.0, %v430
  %v432 = vpop.f32.mrb[0].mxu0
  %433 = vmatprep.mubr.f32.mxu0 0.0
  %v434 = vand.u32 %v126, 4294901760
  %v435 = vsub.f32 %v126, %v434
  %v436 = vand.u32 %v435, 4294901760
  %v437 = vsub.f32 %v435, %v436
  %v438 = vand.u32 %v437, 4294901760
  %439 = vmatmul.mubr.f32.gmra.mrb[0].mxu0 %v438
  %v440 = vpop.f32.mrb[0].mxu0
  %v441 = vadd.f32 0.0, %v440
  %v442 = vpop.f32.mrb[0].mxu0
  %443 = vmatprep.mubr.f32.mxu0 0.0
  %v444 = vand.u32 %v127, 4294901760
  %v445 = vsub.f32 %v127, %v444
  %v446 = vand.u32 %v445, 4294901760
  %v447 = vsub.f32 %v445, %v446
  %v448 = vand.u32 %v447, 4294901760
  %449 = vmatmul.mubr.f32.gmra.mrb[0].mxu0 %v448
  %v450 = vpop.f32.mrb[0].mxu0
  %v451 = vadd.f32 0.0, %v450
  %v452 = vpop.f32.mrb[0].mxu0
  %453 = vmatprep.mubr.f32.mxu0 0.0
  %v454 = vand.u32 %v128, 4294901760
  %v455 = vsub.f32 %v128, %v454
  %v456 = vand.u32 %v455, 4294901760
  %v457 = vsub.f32 %v455, %v456
  %v458 = vand.u32 %v457, 4294901760
  %459 = vmatmul.mubr.f32.gmra.mrb[0].mxu0 %v458
  %v460 = vpop.f32.mrb[0].mxu0
  %v461 = vadd.f32 0.0, %v460
  %v462 = vpop.f32.mrb[0].mxu0
  %463 = vmatprep.mubr.f32.mxu0 0.0
  %v464 = vand.u32 %v129, 4294901760
  %v465 = vsub.f32 %v129, %v464
  %v466 = vand.u32 %v465, 4294901760
  %v467 = vsub.f32 %v465, %v466
  %v468 = vand.u32 %v467, 4294901760
  %469 = vmatmul.mubr.f32.gmra.mrb[0].mxu0 %v468
  %v470 = vpop.f32.mrb[0].mxu0
  %v471 = vadd.f32 0.0, %v470
  %v472 = vpop.f32.mrb[0].mxu0
  %473 = vmatprep.mubr.f32.mxu0 0.0
  %v474 = vand.u32 %v130, 4294901760
  %v475 = vsub.f32 %v130, %v474
  %v476 = vand.u32 %v475, 4294901760
  %v477 = vsub.f32 %v475, %v476
  %v478 = vand.u32 %v477, 4294901760
  %479 = vmatmul.mubr.f32.gmra.mrb[0].mxu0 %v478
  %v480 = vpop.f32.mrb[0].mxu0
  %v481 = vadd.f32 0.0, %v480
  %v482 = vpop.f32.mrb[0].mxu0
  %483 = vdwg.mxu0
  %484 = vmatprep.subr.mxu0 0.0
  %v485 = vand.u32 %v227, 4294901760
  %v486 = vsub.f32 %v227, %v485
  %v487 = vand.u32 %v486, 4294901760
  %v488 = vsub.f32 %v486, %v487
  %v489 = vand.u32 %v488, 4294901760
  %490 = vmatpush1.msra.mxu0 %v489
  %491 = vmatprep.subr.mxu0 0.0
  %v492 = vand.u32 %v228, 4294901760
  %v493 = vsub.f32 %v228, %v492
  %v494 = vand.u32 %v493, 4294901760
  %v495 = vsub.f32 %v493, %v494
  %v496 = vand.u32 %v495, 4294901760
  %497 = vmatpush1.msra.mxu0 %v496
  %498 = vmatprep.subr.mxu0 0.0
  %v499 = vand.u32 %v229, 4294901760
  %v500 = vsub.f32 %v229, %v499
  %v501 = vand.u32 %v500, 4294901760
  %v502 = vsub.f32 %v500, %v501
  %v503 = vand.u32 %v502, 4294901760
  %504 = vmatpush1.msra.mxu0 %v503
  %505 = vmatprep.subr.mxu0 0.0
  %v506 = vand.u32 %v230, 4294901760
  %v507 = vsub.f32 %v230, %v506
  %v508 = vand.u32 %v507, 4294901760
  %v509 = vsub.f32 %v507, %v508
  %v510 = vand.u32 %v509, 4294901760
  %511 = vmatpush1.msra.mxu0 %v510
  %512 = vmatprep.subr.mxu0 0.0
  %v513 = vand.u32 %v231, 4294901760
  %v514 = vsub.f32 %v231, %v513
  %v515 = vand.u32 %v514, 4294901760
  %v516 = vsub.f32 %v514, %v515
  %v517 = vand.u32 %v516, 4294901760
  %518 = vmatpush1.msra.mxu0 %v517
  %519 = vmatprep.subr.mxu0 0.0
  %v520 = vand.u32 %v232, 4294901760
  %v521 = vsub.f32 %v232, %v520
  %v522 = vand.u32 %v521, 4294901760
  %v523 = vsub.f32 %v521, %v522
  %v524 = vand.u32 %v523, 4294901760
  %525 = vmatpush1.msra.mxu0 %v524
  %526 = vmatprep.subr.mxu0 0.0
  %v527 = vand.u32 %v233, 4294901760
  %v528 = vsub.f32 %v233, %v527
  %v529 = vand.u32 %v528, 4294901760
  %v530 = vsub.f32 %v528, %v529
  %v531 = vand.u32 %v530, 4294901760
  %532 = vmatpush1.msra.mxu0 %v531
  %533 = vmatprep.subr.mxu0 0.0
  %v534 = vand.u32 %v234, 4294901760
  %v535 = vsub.f32 %v234, %v534
  %v536 = vand.u32 %v535, 4294901760
  %v537 = vsub.f32 %v535, %v536
  %v538 = vand.u32 %v537, 4294901760
  %539 = vmatpush1.msra.mxu0 %v538
  %540 = vmatprep.subr.mxu0 0.0
  %v541 = vand.u32 %v235, 4294901760
  %v542 = vsub.f32 %v235, %v541
  %v543 = vand.u32 %v542, 4294901760
  %v544 = vsub.f32 %v542, %v543
  %v545 = vand.u32 %v544, 4294901760
  %546 = vmatpush1.msra.mxu0 %v545
  %547 = vmatprep.subr.mxu0 0.0
  %v548 = vand.u32 %v236, 4294901760
  %v549 = vsub.f32 %v236, %v548
  %v550 = vand.u32 %v549, 4294901760
  %v551 = vsub.f32 %v549, %v550
  %v552 = vand.u32 %v551, 4294901760
  %553 = vmatpush1.msra.mxu0 %v552
  %554 = vmatprep.subr.mxu0 0.0
  %v555 = vand.u32 %v237, 4294901760
  %v556 = vsub.f32 %v237, %v555
  %v557 = vand.u32 %v556, 4294901760
  %v558 = vsub.f32 %v556, %v557
  %v559 = vand.u32 %v558, 4294901760
  %560 = vmatpush1.msra.mxu0 %v559
  %561 = vmatprep.subr.mxu0 0.0
  %v562 = vand.u32 %v238, 4294901760
  %v563 = vsub.f32 %v238, %v562
  %v564 = vand.u32 %v563, 4294901760
  %v565 = vsub.f32 %v563, %v564
  %v566 = vand.u32 %v565, 4294901760
  %567 = vmatpush1.msra.mxu0 %v566
  %568 = vmatprep.subr.mxu0 0.0
  %v569 = vand.u32 %v239, 4294901760
  %v570 = vsub.f32 %v239, %v569
  %v571 = vand.u32 %v570, 4294901760
  %v572 = vsub.f32 %v570, %v571
  %v573 = vand.u32 %v572, 4294901760
  %574 = vmatpush1.msra.mxu0 %v573
  %575 = vmatprep.subr.mxu0 0.0
  %v576 = vand.u32 %v240, 4294901760
  %v577 = vsub.f32 %v240, %v576
  %v578 = vand.u32 %v577, 4294901760
  %v579 = vsub.f32 %v577, %v578
  %v580 = vand.u32 %v579, 4294901760
  %581 = vmatpush1.msra.mxu0 %v580
  %582 = vmatprep.subr.mxu0 0.0
  %v583 = vand.u32 %v241, 4294901760
  %v584 = vsub.f32 %v241, %v583
  %v585 = vand.u32 %v584, 4294901760
  %v586 = vsub.f32 %v584, %v585
  %v587 = vand.u32 %v586, 4294901760
  %588 = vmatpush1.msra.mxu0 %v587
  %589 = vmatprep.subr.mxu0 0.0
  %v590 = vand.u32 %v242, 4294901760
  %v591 = vsub.f32 %v242, %v590
  %v592 = vand.u32 %v591, 4294901760
  %v593 = vsub.f32 %v591, %v592
  %v594 = vand.u32 %v593, 4294901760
  %595 = vmatpush1.msra.mxu0 %v594
  %596 = vmatprep.subr.mxu0 0.0
  %597 = vmatpush1.msra.mxu0 0.0
  %598 = vmatprep.subr.mxu0 0.0
  %599 = vmatpush1.msra.mxu0 0.0
  %600 = vmatprep.subr.mxu0 0.0
  %601 = vmatpush1.msra.mxu0 0.0
  %602 = vmatprep.subr.mxu0 0.0
  %603 = vmatpush1.msra.mxu0 0.0
  %604 = vmatprep.subr.mxu0 0.0
  %605 = vmatpush1.msra.mxu0 0.0
  %606 = vmatprep.subr.mxu0 0.0
  %607 = vmatpush1.msra.mxu0 0.0
  %608 = vmatprep.subr.mxu0 0.0
  %609 = vmatpush1.msra.mxu0 0.0
  %610 = vmatprep.subr.mxu0 0.0
  %611 = vmatpush1.msra.mxu0 0.0
  %612 = vmatprep.subr.mxu0 0.0
  %613 = vmatpush1.msra.mxu0 0.0
  %614 = vmatprep.subr.mxu0 0.0
  %615 = vmatpush1.msra.mxu0 0.0
  %616 = vmatprep.subr.mxu0 0.0
  %617 = vmatpush1.msra.mxu0 0.0
  %618 = vmatprep.subr.mxu0 0.0
  %619 = vmatpush1.msra.mxu0 0.0
  %620 = vmatprep.subr.mxu0 0.0
  %621 = vmatpush1.msra.mxu0 0.0
  %622 = vmatprep.subr.mxu0 0.0
  %623 = vmatpush1.msra.mxu0 0.0
  %624 = vmatprep.subr.mxu0 0.0
  %625 = vmatpush1.msra.mxu0 0.0
  %626 = vmatprep.subr.mxu0 0.0
  %627 = vmatpush1.msra.mxu0 0.0
  %628 = vmatprep.mubr.f32.mxu0 0.0
  %v629 = vand.u32 %v115, 4294901760
  %630 = vmatmul.mubr.f32.gmra.mrb[0].mxu0 %v629
  %v631 = vpop.f32.mrb[0].mxu0
  %v632 = vadd.f32 %v331, %v631
  %v633 = vpop.f32.mrb[0].mxu0
  %634 = vmatprep.mubr.f32.mxu0 0.0
  %v635 = vand.u32 %v116, 4294901760
  %636 = vmatmul.mubr.f32.gmra.mrb[0].mxu0 %v635
  %v637 = vpop.f32.mrb[0].mxu0
  %v638 = vadd.f32 %v341, %v637
  %v639 = vpop.f32.mrb[0].mxu0
  %640 = vmatprep.mubr.f32.mxu0 0.0
  %v641 = vand.u32 %v117, 4294901760
  %642 = vmatmul.mubr.f32.gmra.mrb[0].mxu0 %v641
  %v643 = vpop.f32.mrb[0].mxu0
  %v644 = vadd.f32 %v351, %v643
  %v645 = vpop.f32.mrb[0].mxu0
  %646 = vmatprep.mubr.f32.mxu0 0.0
  %v647 = vand.u32 %v118, 4294901760
  %648 = vmatmul.mubr.f32.gmra.mrb[0].mxu0 %v647
  %v649 = vpop.f32.mrb[0].mxu0
  %v650 = vadd.f32 %v361, %v649
  %v651 = vpop.f32.mrb[0].mxu0
  %652 = vmatprep.mubr.f32.mxu0 0.0
  %v653 = vand.u32 %v119, 4294901760
  %654 = vmatmul.mubr.f32.gmra.mrb[0].mxu0 %v653
  %v655 = vpop.f32.mrb[0].mxu0
  %v656 = vadd.f32 %v371, %v655
  %v657 = vpop.f32.mrb[0].mxu0
  %658 = vmatprep.mubr.f32.mxu0 0.0
  %v659 = vand.u32 %v120, 4294901760
  %660 = vmatmul.mubr.f32.gmra.mrb[0].mxu0 %v659
  %v661 = vpop.f32.mrb[0].mxu0
  %v662 = vadd.f32 %v381, %v661
  %v663 = vpop.f32.mrb[0].mxu0
  %664 = vmatprep.mubr.f32.mxu0 0.0
  %v665 = vand.u32 %v121, 4294901760
  %666 = vmatmul.mubr.f32.gmra.mrb[0].mxu0 %v665
  %v667 = vpop.f32.mrb[0].mxu0
  %v668 = vadd.f32 %v391, %v667
  %v669 = vpop.f32.mrb[0].mxu0
  %670 = vmatprep.mubr.f32.mxu0 0.0
  %v671 = vand.u32 %v122, 4294901760
  %672 = vmatmul.mubr.f32.gmra.mrb[0].mxu0 %v671
  %v673 = vpop.f32.mrb[0].mxu0
  %v674 = vadd.f32 %v401, %v673
  %v675 = vpop.f32.mrb[0].mxu0
  %676 = vmatprep.mubr.f32.mxu0 0.0
  %v677 = vand.u32 %v123, 4294901760
  %678 = vmatmul.mubr.f32.gmra.mrb[0].mxu0 %v677
  %v679 = vpop.f32.mrb[0].mxu0
  %v680 = vadd.f32 %v411, %v679
  %v681 = vpop.f32.mrb[0].mxu0
  %682 = vmatprep.mubr.f32.mxu0 0.0
  %v683 = vand.u32 %v124, 4294901760
  %684 = vmatmul.mubr.f32.gmra.mrb[0].mxu0 %v683
  %v685 = vpop.f32.mrb[0].mxu0
  %v686 = vadd.f32 %v421, %v685
  %v687 = vpop.f32.mrb[0].mxu0
  %688 = vmatprep.mubr.f32.mxu0 0.0
  %v689 = vand.u32 %v125, 4294901760
  %690 = vmatmul.mubr.f32.gmra.mrb[0].mxu0 %v689
  %v691 = vpop.f32.mrb[0].mxu0
  %v692 = vadd.f32 %v431, %v691
  %v693 = vpop.f32.mrb[0].mxu0
  %694 = vmatprep.mubr.f32.mxu0 0.0
  %v695 = vand.u32 %v126, 4294901760
  %696 = vmatmul.mubr.f32.gmra.mrb[0].mxu0 %v695
  %v697 = vpop.f32.mrb[0].mxu0
  %v698 = vadd.f32 %v441, %v697
  %v699 = vpop.f32.mrb[0].mxu0
  %700 = vmatprep.mubr.f32.mxu0 0.0
  %v701 = vand.u32 %v127, 4294901760
  %702 = vmatmul.mubr.f32.gmra.mrb[0].mxu0 %v701
  %v703 = vpop.f32.mrb[0].mxu0
  %v704 = vadd.f32 %v451, %v703
  %v705 = vpop.f32.mrb[0].mxu0
  %706 = vmatprep.mubr.f32.mxu0 0.0
  %v707 = vand.u32 %v128, 4294901760
  %708 = vmatmul.mubr.f32.gmra.mrb[0].mxu0 %v707
  %v709 = vpop.f32.mrb[0].mxu0
  %v710 = vadd.f32 %v461, %v709
  %v711 = vpop.f32.mrb[0].mxu0
  %712 = vmatprep.mubr.f32.mxu0 0.0
  %v713 = vand.u32 %v129, 4294901760
  %714 = vmatmul.mubr.f32.gmra.mrb[0].mxu0 %v713
  %v715 = vpop.f32.mrb[0].mxu0
  %v716 = vadd.f32 %v471, %v715
  %v717 = vpop.f32.mrb[0].mxu0
  %718 = vmatprep.mubr.f32.mxu0 0.0
  %v719 = vand.u32 %v130, 4294901760
  %720 = vmatmul.mubr.f32.gmra.mrb[0].mxu0 %v719
  %v721 = vpop.f32.mrb[0].mxu0
  %v722 = vadd.f32 %v481, %v721
  %v723 = vpop.f32.mrb[0].mxu0
  %724 = vdwg.mxu0
  %725 = vmatprep.subr.mxu0 0.0
  %v726 = vand.u32 %v227, 4294901760
  %v727 = vsub.f32 %v227, %v726
  %728 = vmatpush1.msra.mxu0 %v727
  %729 = vmatprep.subr.mxu0 0.0
  %v730 = vand.u32 %v228, 4294901760
  %v731 = vsub.f32 %v228, %v730
  %732 = vmatpush1.msra.mxu0 %v731
  %733 = vmatprep.subr.mxu0 0.0
  %v734 = vand.u32 %v229, 4294901760
  %v735 = vsub.f32 %v229, %v734
  %736 = vmatpush1.msra.mxu0 %v735
  %737 = vmatprep.subr.mxu0 0.0
  %v738 = vand.u32 %v230, 4294901760
  %v739 = vsub.f32 %v230, %v738
  %740 = vmatpush1.msra.mxu0 %v739
  %741 = vmatprep.subr.mxu0 0.0
  %v742 = vand.u32 %v231, 4294901760
  %v743 = vsub.f32 %v231, %v742
  %744 = vmatpush1.msra.mxu0 %v743
  %745 = vmatprep.subr.mxu0 0.0
  %v746 = vand.u32 %v232, 4294901760
  %v747 = vsub.f32 %v232, %v746
  %748 = vmatpush1.msra.mxu0 %v747
  %749 = vmatprep.subr.mxu0 0.0
  %v750 = vand.u32 %v233, 4294901760
  %v751 = vsub.f32 %v233, %v750
  %752 = vmatpush1.msra.mxu0 %v751
  %753 = vmatprep.subr.mxu0 0.0
  %v754 = vand.u32 %v234, 4294901760
  %v755 = vsub.f32 %v234, %v754
  %756 = vmatpush1.msra.mxu0 %v755
  %757 = vmatprep.subr.mxu0 0.0
  %v758 = vand.u32 %v235, 4294901760
  %v759 = vsub.f32 %v235, %v758
  %760 = vmatpush1.msra.mxu0 %v759
  %761 = vmatprep.subr.mxu0 0.0
  %v762 = vand.u32 %v236, 4294901760
  %v763 = vsub.f32 %v236, %v762
  %764 = vmatpush1.msra.mxu0 %v763
  %765 = vmatprep.subr.mxu0 0.0
  %v766 = vand.u32 %v237, 4294901760
  %v767 = vsub.f32 %v237, %v766
  %768 = vmatpush1.msra.mxu0 %v767
  %769 = vmatprep.subr.mxu0 0.0
  %v770 = vand.u32 %v238, 4294901760
  %v771 = vsub.f32 %v238, %v770
  %772 = vmatpush1.msra.mxu0 %v771
  %773 = vmatprep.subr.mxu0 0.0
  %v774 = vand.u32 %v239, 4294901760
  %v775 = vsub.f32 %v239, %v774
  %776 = vmatpush1.msra.mxu0 %v775
  %777 = vmatprep.subr.mxu0 0.0
  %v778 = vand.u32 %v240, 4294901760
  %v779 = vsub.f32 %v240, %v778
  %780 = vmatpush1.msra.mxu0 %v779
  %781 = vmatprep.subr.mxu0 0.0
  %v782 = vand.u32 %v241, 4294901760
  %v783 = vsub.f32 %v241, %v782
  %784 = vmatpush1.msra.mxu0 %v783
  %785 = vmatprep.subr.mxu0 0.0
  %v786 = vand.u32 %v242, 4294901760
  %v787 = vsub.f32 %v242, %v786
  %788 = vmatpush1.msra.mxu0 %v787
  %789 = vmatprep.subr.mxu0 0.0
  %790 = vmatpush1.msra.mxu0 0.0
  %791 = vmatprep.subr.mxu0 0.0
  %792 = vmatpush1.msra.mxu0 0.0
  %793 = vmatprep.subr.mxu0 0.0
  %794 = vmatpush1.msra.mxu0 0.0
  %795 = vmatprep.subr.mxu0 0.0
  %796 = vmatpush1.msra.mxu0 0.0
  %797 = vmatprep.subr.mxu0 0.0
  %798 = vmatpush1.msra.mxu0 0.0
  %799 = vmatprep.subr.mxu0 0.0
  %800 = vmatpush1.msra.mxu0 0.0
  %801 = vmatprep.subr.mxu0 0.0
  %802 = vmatpush1.msra.mxu0 0.0
  %803 = vmatprep.subr.mxu0 0.0
  %804 = vmatpush1.msra.mxu0 0.0
  %805 = vmatprep.subr.mxu0 0.0
  %806 = vmatpush1.msra.mxu0 0.0
  %807 = vmatprep.subr.mxu0 0.0
  %808 = vmatpush1.msra.mxu0 0.0
  %809 = vmatprep.subr.mxu0 0.0
  %810 = vmatpush1.msra.mxu0 0.0
  %811 = vmatprep.subr.mxu0 0.0
  %812 = vmatpush1.msra.mxu0 0.0
  %813 = vmatprep.subr.mxu0 0.0
  %814 = vmatpush1.msra.mxu0 0.0
  %815 = vmatprep.subr.mxu0 0.0
  %816 = vmatpush1.msra.mxu0 0.0
  %817 = vmatprep.subr.mxu0 0.0
  %818 = vmatpush1.msra.mxu0 0.0
  %819 = vmatprep.subr.mxu0 0.0
  %820 = vmatpush1.msra.mxu0 0.0
  %821 = vmatprep.mubr.f32.mxu0 0.0
  %v822 = vand.u32 %v115, 4294901760
  %v823 = vsub.f32 %v115, %v822
  %824 = vmatmul.mubr.f32.gmra.mrb[0].mxu0 %v823
  %v825 = vpop.f32.mrb[0].mxu0
  %v826 = vadd.f32 %v632, %v825
  %v827 = vpop.f32.mrb[0].mxu0
  %828 = vmatprep.mubr.f32.mxu0 0.0
  %v829 = vand.u32 %v116, 4294901760
  %v830 = vsub.f32 %v116, %v829
  %831 = vmatmul.mubr.f32.gmra.mrb[0].mxu0 %v830
  %v832 = vpop.f32.mrb[0].mxu0
  %v833 = vadd.f32 %v638, %v832
  %v834 = vpop.f32.mrb[0].mxu0
  %835 = vmatprep.mubr.f32.mxu0 0.0
  %v836 = vand.u32 %v117, 4294901760
  %v837 = vsub.f32 %v117, %v836
  %838 = vmatmul.mubr.f32.gmra.mrb[0].mxu0 %v837
  %v839 = vpop.f32.mrb[0].mxu0
  %v840 = vadd.f32 %v644, %v839
  %v841 = vpop.f32.mrb[0].mxu0
  %842 = vmatprep.mubr.f32.mxu0 0.0
  %v843 = vand.u32 %v118, 4294901760
  %v844 = vsub.f32 %v118, %v843
  %845 = vmatmul.mubr.f32.gmra.mrb[0].mxu0 %v844
  %v846 = vpop.f32.mrb[0].mxu0
  %v847 = vadd.f32 %v650, %v846
  %v848 = vpop.f32.mrb[0].mxu0
  %849 = vmatprep.mubr.f32.mxu0 0.0
  %v850 = vand.u32 %v119, 4294901760
  %v851 = vsub.f32 %v119, %v850
  %852 = vmatmul.mubr.f32.gmra.mrb[0].mxu0 %v851
  %v853 = vpop.f32.mrb[0].mxu0
  %v854 = vadd.f32 %v656, %v853
  %v855 = vpop.f32.mrb[0].mxu0
  %856 = vmatprep.mubr.f32.mxu0 0.0
  %v857 = vand.u32 %v120, 4294901760
  %v858 = vsub.f32 %v120, %v857
  %859 = vmatmul.mubr.f32.gmra.mrb[0].mxu0 %v858
  %v860 = vpop.f32.mrb[0].mxu0
  %v861 = vadd.f32 %v662, %v860
  %v862 = vpop.f32.mrb[0].mxu0
  %863 = vmatprep.mubr.f32.mxu0 0.0
  %v864 = vand.u32 %v121, 4294901760
  %v865 = vsub.f32 %v121, %v864
  %866 = vmatmul.mubr.f32.gmra.mrb[0].mxu0 %v865
  %v867 = vpop.f32.mrb[0].mxu0
  %v868 = vadd.f32 %v668, %v867
  %v869 = vpop.f32.mrb[0].mxu0
  %870 = vmatprep.mubr.f32.mxu0 0.0
  %v871 = vand.u32 %v122, 4294901760
  %v872 = vsub.f32 %v122, %v871
  %873 = vmatmul.mubr.f32.gmra.mrb[0].mxu0 %v872
  %v874 = vpop.f32.mrb[0].mxu0
  %v875 = vadd.f32 %v674, %v874
  %v876 = vpop.f32.mrb[0].mxu0
  %877 = vmatprep.mubr.f32.mxu0 0.0
  %v878 = vand.u32 %v123, 4294901760
  %v879 = vsub.f32 %v123, %v878
  %880 = vmatmul.mubr.f32.gmra.mrb[0].mxu0 %v879
  %v881 = vpop.f32.mrb[0].mxu0
  %v882 = vadd.f32 %v680, %v881
  %v883 = vpop.f32.mrb[0].mxu0
  %884 = vmatprep.mubr.f32.mxu0 0.0
  %v885 = vand.u32 %v124, 4294901760
  %v886 = vsub.f32 %v124, %v885
  %887 = vmatmul.mubr.f32.gmra.mrb[0].mxu0 %v886
  %v888 = vpop.f32.mrb[0].mxu0
  %v889 = vadd.f32 %v686, %v888
  %v890 = vpop.f32.mrb[0].mxu0
  %891 = vmatprep.mubr.f32.mxu0 0.0
  %v892 = vand.u32 %v125, 4294901760
  %v893 = vsub.f32 %v125, %v892
  %894 = vmatmul.mubr.f32.gmra.mrb[0].mxu0 %v893
  %v895 = vpop.f32.mrb[0].mxu0
  %v896 = vadd.f32 %v692, %v895
  %v897 = vpop.f32.mrb[0].mxu0
  %898 = vmatprep.mubr.f32.mxu0 0.0
  %v899 = vand.u32 %v126, 4294901760
  %v900 = vsub.f32 %v126, %v899
  %901 = vmatmul.mubr.f32.gmra.mrb[0].mxu0 %v900
  %v902 = vpop.f32.mrb[0].mxu0
  %v903 = vadd.f32 %v698, %v902
  %v904 = vpop.f32.mrb[0].mxu0
  %905 = vmatprep.mubr.f32.mxu0 0.0
  %v906 = vand.u32 %v127, 4294901760
  %v907 = vsub.f32 %v127, %v906
  %908 = vmatmul.mubr.f32.gmra.mrb[0].mxu0 %v907
  %v909 = vpop.f32.mrb[0].mxu0
  %v910 = vadd.f32 %v704, %v909
  %v911 = vpop.f32.mrb[0].mxu0
  %912 = vmatprep.mubr.f32.mxu0 0.0
  %v913 = vand.u32 %v128, 4294901760
  %v914 = vsub.f32 %v128, %v913
  %915 = vmatmul.mubr.f32.gmra.mrb[0].mxu0 %v914
  %v916 = vpop.f32.mrb[0].mxu0
  %v917 = vadd.f32 %v710, %v916
  %v918 = vpop.f32.mrb[0].mxu0
  %919 = vmatprep.mubr.f32.mxu0 0.0
  %v920 = vand.u32 %v129, 4294901760
  %v921 = vsub.f32 %v129, %v920
  %922 = vmatmul.mubr.f32.gmra.mrb[0].mxu0 %v921
  %v923 = vpop.f32.mrb[0].mxu0
  %v924 = vadd.f32 %v716, %v923
  %v925 = vpop.f32.mrb[0].mxu0
  %926 = vmatprep.mubr.f32.mxu0 0.0
  %v927 = vand.u32 %v130, 4294901760
  %v928 = vsub.f32 %v130, %v927
  %929 = vmatmul.mubr.f32.gmra.mrb[0].mxu0 %v928
  %v930 = vpop.f32.mrb[0].mxu0
  %v931 = vadd.f32 %v722, %v930
  %v932 = vpop.f32.mrb[0].mxu0
  %933 = vdwg.mxu0
  %934 = vmatprep.subr.mxu0 0.0
  %v935 = vand.u32 %v227, 4294901760
  %936 = vmatpush1.msra.mxu0 %v935
  %937 = vmatprep.subr.mxu0 0.0
  %v938 = vand.u32 %v228, 4294901760
  %939 = vmatpush1.msra.mxu0 %v938
  %940 = vmatprep.subr.mxu0 0.0
  %v941 = vand.u32 %v229, 4294901760
  %942 = vmatpush1.msra.mxu0 %v941
  %943 = vmatprep.subr.mxu0 0.0
  %v944 = vand.u32 %v230, 4294901760
  %945 = vmatpush1.msra.mxu0 %v944
  %946 = vmatprep.subr.mxu0 0.0
  %v947 = vand.u32 %v231, 4294901760
  %948 = vmatpush1.msra.mxu0 %v947
  %949 = vmatprep.subr.mxu0 0.0
  %v950 = vand.u32 %v232, 4294901760
  %951 = vmatpush1.msra.mxu0 %v950
  %952 = vmatprep.subr.mxu0 0.0
  %v953 = vand.u32 %v233, 4294901760
  %954 = vmatpush1.msra.mxu0 %v953
  %955 = vmatprep.subr.mxu0 0.0
  %v956 = vand.u32 %v234, 4294901760
  %957 = vmatpush1.msra.mxu0 %v956
  %958 = vmatprep.subr.mxu0 0.0
  %v959 = vand.u32 %v235, 4294901760
  %960 = vmatpush1.msra.mxu0 %v959
  %961 = vmatprep.subr.mxu0 0.0
  %v962 = vand.u32 %v236, 4294901760
  %963 = vmatpush1.msra.mxu0 %v962
  %964 = vmatprep.subr.mxu0 0.0
  %v965 = vand.u32 %v237, 4294901760
  %966 = vmatpush1.msra.mxu0 %v965
  %967 = vmatprep.subr.mxu0 0.0
  %v968 = vand.u32 %v238, 4294901760
  %969 = vmatpush1.msra.mxu0 %v968
  %970 = vmatprep.subr.mxu0 0.0
  %v971 = vand.u32 %v239, 4294901760
  %972 = vmatpush1.msra.mxu0 %v971
  %973 = vmatprep.subr.mxu0 0.0
  %v974 = vand.u32 %v240, 4294901760
  %975 = vmatpush1.msra.mxu0 %v974
  %976 = vmatprep.subr.mxu0 0.0
  %v977 = vand.u32 %v241, 4294901760
  %978 = vmatpush1.msra.mxu0 %v977
  %979 = vmatprep.subr.mxu0 0.0
  %v980 = vand.u32 %v242, 4294901760
  %981 = vmatpush1.msra.mxu0 %v980
  %982 = vmatprep.subr.mxu0 0.0
  %983 = vmatpush1.msra.mxu0 0.0
  %984 = vmatprep.subr.mxu0 0.0
  %985 = vmatpush1.msra.mxu0 0.0
  %986 = vmatprep.subr.mxu0 0.0
  %987 = vmatpush1.msra.mxu0 0.0
  %988 = vmatprep.subr.mxu0 0.0
  %989 = vmatpush1.msra.mxu0 0.0
  %990 = vmatprep.subr.mxu0 0.0
  %991 = vmatpush1.msra.mxu0 0.0
  %992 = vmatprep.subr.mxu0 0.0
  %993 = vmatpush1.msra.mxu0 0.0
  %994 = vmatprep.subr.mxu0 0.0
  %995 = vmatpush1.msra.mxu0 0.0
  %996 = vmatprep.subr.mxu0 0.0
  %997 = vmatpush1.msra.mxu0 0.0
  %998 = vmatprep.subr.mxu0 0.0
  %999 = vmatpush1.msra.mxu0 0.0
  %1000 = vmatprep.subr.mxu0 0.0
  %1001 = vmatpush1.msra.mxu0 0.0
  %1002 = vmatprep.subr.mxu0 0.0
  %1003 = vmatpush1.msra.mxu0 0.0
  %1004 = vmatprep.subr.mxu0 0.0
  %1005 = vmatpush1.msra.mxu0 0.0
  %1006 = vmatprep.subr.mxu0 0.0
  %1007 = vmatpush1.msra.mxu0 0.0
  %1008 = vmatprep.subr.mxu0 0.0
  %1009 = vmatpush1.msra.mxu0 0.0
  %1010 = vmatprep.subr.mxu0 0.0
  %1011 = vmatpush1.msra.mxu0 0.0
  %1012 = vmatprep.subr.mxu0 0.0
  %1013 = vmatpush1.msra.mxu0 0.0
  %1014 = vmatprep.mubr.f32.mxu0 0.0
  %v1015 = vand.u32 %v115, 4294901760
  %v1016 = vsub.f32 %v115, %v1015
  %v1017 = vand.u32 %v1016, 4294901760
  %1018 = vmatmul.mubr.f32.gmra.mrb[0].mxu0 %v1017
  %v1019 = vpop.f32.mrb[0].mxu0
  %v1020 = vadd.f32 %v826, %v1019
  %v1021 = vpop.f32.mrb[0].mxu0
  %1022 = vmatprep.mubr.f32.mxu0 0.0
  %v1023 = vand.u32 %v116, 4294901760
  %v1024 = vsub.f32 %v116, %v1023
  %v1025 = vand.u32 %v1024, 4294901760
  %1026 = vmatmul.mubr.f32.gmra.mrb[0].mxu0 %v1025
  %v1027 = vpop.f32.mrb[0].mxu0
  %v1028 = vadd.f32 %v833, %v1027
  %v1029 = vpop.f32.mrb[0].mxu0
  %1030 = vmatprep.mubr.f32.mxu0 0.0
  %v1031 = vand.u32 %v117, 4294901760
  %v1032 = vsub.f32 %v117, %v1031
  %v1033 = vand.u32 %v1032, 4294901760
  %1034 = vmatmul.mubr.f32.gmra.mrb[0].mxu0 %v1033
  %v1035 = vpop.f32.mrb[0].mxu0
  %v1036 = vadd.f32 %v840, %v1035
  %v1037 = vpop.f32.mrb[0].mxu0
  %1038 = vmatprep.mubr.f32.mxu0 0.0
  %v1039 = vand.u32 %v118, 4294901760
  %v1040 = vsub.f32 %v118, %v1039
  %v1041 = vand.u32 %v1040, 4294901760
  %1042 = vmatmul.mubr.f32.gmra.mrb[0].mxu0 %v1041
  %v1043 = vpop.f32.mrb[0].mxu0
  %v1044 = vadd.f32 %v847, %v1043
  %v1045 = vpop.f32.mrb[0].mxu0
  %1046 = vmatprep.mubr.f32.mxu0 0.0
  %v1047 = vand.u32 %v119, 4294901760
  %v1048 = vsub.f32 %v119, %v1047
  %v1049 = vand.u32 %v1048, 4294901760
  %1050 = vmatmul.mubr.f32.gmra.mrb[0].mxu0 %v1049
  %v1051 = vpop.f32.mrb[0].mxu0
  %v1052 = vadd.f32 %v854, %v1051
  %v1053 = vpop.f32.mrb[0].mxu0
  %1054 = vmatprep.mubr.f32.mxu0 0.0
  %v1055 = vand.u32 %v120, 4294901760
  %v1056 = vsub.f32 %v120, %v1055
  %v1057 = vand.u32 %v1056, 4294901760
  %1058 = vmatmul.mubr.f32.gmra.mrb[0].mxu0 %v1057
  %v1059 = vpop.f32.mrb[0].mxu0
  %v1060 = vadd.f32 %v861, %v1059
  %v1061 = vpop.f32.mrb[0].mxu0
  %1062 = vmatprep.mubr.f32.mxu0 0.0
  %v1063 = vand.u32 %v121, 4294901760
  %v1064 = vsub.f32 %v121, %v1063
  %v1065 = vand.u32 %v1064, 4294901760
  %1066 = vmatmul.mubr.f32.gmra.mrb[0].mxu0 %v1065
  %v1067 = vpop.f32.mrb[0].mxu0
  %v1068 = vadd.f32 %v868, %v1067
  %v1069 = vpop.f32.mrb[0].mxu0
  %1070 = vmatprep.mubr.f32.mxu0 0.0
  %v1071 = vand.u32 %v122, 4294901760
  %v1072 = vsub.f32 %v122, %v1071
  %v1073 = vand.u32 %v1072, 4294901760
  %1074 = vmatmul.mubr.f32.gmra.mrb[0].mxu0 %v1073
  %v1075 = vpop.f32.mrb[0].mxu0
  %v1076 = vadd.f32 %v875, %v1075
  %v1077 = vpop.f32.mrb[0].mxu0
  %1078 = vmatprep.mubr.f32.mxu0 0.0
  %v1079 = vand.u32 %v123, 4294901760
  %v1080 = vsub.f32 %v123, %v1079
  %v1081 = vand.u32 %v1080, 4294901760
  %1082 = vmatmul.mubr.f32.gmra.mrb[0].mxu0 %v1081
  %v1083 = vpop.f32.mrb[0].mxu0
  %v1084 = vadd.f32 %v882, %v1083
  %v1085 = vpop.f32.mrb[0].mxu0
  %1086 = vmatprep.mubr.f32.mxu0 0.0
  %v1087 = vand.u32 %v124, 4294901760
  %v1088 = vsub.f32 %v124, %v1087
  %v1089 = vand.u32 %v1088, 4294901760
  %1090 = vmatmul.mubr.f32.gmra.mrb[0].mxu0 %v1089
  %v1091 = vpop.f32.mrb[0].mxu0
  %v1092 = vadd.f32 %v889, %v1091
  %v1093 = vpop.f32.mrb[0].mxu0
  %1094 = vmatprep.mubr.f32.mxu0 0.0
  %v1095 = vand.u32 %v125, 4294901760
  %v1096 = vsub.f32 %v125, %v1095
  %v1097 = vand.u32 %v1096, 4294901760
  %1098 = vmatmul.mubr.f32.gmra.mrb[0].mxu0 %v1097
  %v1099 = vpop.f32.mrb[0].mxu0
  %v1100 = vadd.f32 %v896, %v1099
  %v1101 = vpop.f32.mrb[0].mxu0
  %1102 = vmatprep.mubr.f32.mxu0 0.0
  %v1103 = vand.u32 %v126, 4294901760
  %v1104 = vsub.f32 %v126, %v1103
  %v1105 = vand.u32 %v1104, 4294901760
  %1106 = vmatmul.mubr.f32.gmra.mrb[0].mxu0 %v1105
  %v1107 = vpop.f32.mrb[0].mxu0
  %v1108 = vadd.f32 %v903, %v1107
  %v1109 = vpop.f32.mrb[0].mxu0
  %1110 = vmatprep.mubr.f32.mxu0 0.0
  %v1111 = vand.u32 %v127, 4294901760
  %v1112 = vsub.f32 %v127, %v1111
  %v1113 = vand.u32 %v1112, 4294901760
  %1114 = vmatmul.mubr.f32.gmra.mrb[0].mxu0 %v1113
  %v1115 = vpop.f32.mrb[0].mxu0
  %v1116 = vadd.f32 %v910, %v1115
  %v1117 = vpop.f32.mrb[0].mxu0
  %1118 = vmatprep.mubr.f32.mxu0 0.0
  %v1119 = vand.u32 %v128, 4294901760
  %v1120 = vsub.f32 %v128, %v1119
  %v1121 = vand.u32 %v1120, 4294901760
  %1122 = vmatmul.mubr.f32.gmra.mrb[0].mxu0 %v1121
  %v1123 = vpop.f32.mrb[0].mxu0
  %v1124 = vadd.f32 %v917, %v1123
  %v1125 = vpop.f32.mrb[0].mxu0
  %1126 = vmatprep.mubr.f32.mxu0 0.0
  %v1127 = vand.u32 %v129, 4294901760
  %v1128 = vsub.f32 %v129, %v1127
  %v1129 = vand.u32 %v1128, 4294901760
  %1130 = vmatmul.mubr.f32.gmra.mrb[0].mxu0 %v1129
  %v1131 = vpop.f32.mrb[0].mxu0
  %v1132 = vadd.f32 %v924, %v1131
  %v1133 = vpop.f32.mrb[0].mxu0
  %1134 = vmatprep.mubr.f32.mxu0 0.0
  %v1135 = vand.u32 %v130, 4294901760
  %v1136 = vsub.f32 %v130, %v1135
  %v1137 = vand.u32 %v1136, 4294901760
  %1138 = vmatmul.mubr.f32.gmra.mrb[0].mxu0 %v1137
  %v1139 = vpop.f32.mrb[0].mxu0
  %v1140 = vadd.f32 %v931, %v1139
  %v1141 = vpop.f32.mrb[0].mxu0
  %1142 = vdwg.mxu0
  %1143 = vmatprep.subr.mxu0 0.0
  %v1144 = vand.u32 %v227, 4294901760
  %v1145 = vsub.f32 %v227, %v1144
  %v1146 = vand.u32 %v1145, 4294901760
  %1147 = vmatpush1.msra.mxu0 %v1146
  %1148 = vmatprep.subr.mxu0 0.0
  %v1149 = vand.u32 %v228, 4294901760
  %v1150 = vsub.f32 %v228, %v1149
  %v1151 = vand.u32 %v1150, 4294901760
  %1152 = vmatpush1.msra.mxu0 %v1151
  %1153 = vmatprep.subr.mxu0 0.0
  %v1154 = vand.u32 %v229, 4294901760
  %v1155 = vsub.f32 %v229, %v1154
  %v1156 = vand.u32 %v1155, 4294901760
  %1157 = vmatpush1.msra.mxu0 %v1156
  %1158 = vmatprep.subr.mxu0 0.0
  %v1159 = vand.u32 %v230, 4294901760
  %v1160 = vsub.f32 %v230, %v1159
  %v1161 = vand.u32 %v1160, 4294901760
  %1162 = vmatpush1.msra.mxu0 %v1161
  %1163 = vmatprep.subr.mxu0 0.0
  %v1164 = vand.u32 %v231, 4294901760
  %v1165 = vsub.f32 %v231, %v1164
  %v1166 = vand.u32 %v1165, 4294901760
  %1167 = vmatpush1.msra.mxu0 %v1166
  %1168 = vmatprep.subr.mxu0 0.0
  %v1169 = vand.u32 %v232, 4294901760
  %v1170 = vsub.f32 %v232, %v1169
  %v1171 = vand.u32 %v1170, 4294901760
  %1172 = vmatpush1.msra.mxu0 %v1171
  %1173 = vmatprep.subr.mxu0 0.0
  %v1174 = vand.u32 %v233, 4294901760
  %v1175 = vsub.f32 %v233, %v1174
  %v1176 = vand.u32 %v1175, 4294901760
  %1177 = vmatpush1.msra.mxu0 %v1176
  %1178 = vmatprep.subr.mxu0 0.0
  %v1179 = vand.u32 %v234, 4294901760
  %v1180 = vsub.f32 %v234, %v1179
  %v1181 = vand.u32 %v1180, 4294901760
  %1182 = vmatpush1.msra.mxu0 %v1181
  %1183 = vmatprep.subr.mxu0 0.0
  %v1184 = vand.u32 %v235, 4294901760
  %v1185 = vsub.f32 %v235, %v1184
  %v1186 = vand.u32 %v1185, 4294901760
  %1187 = vmatpush1.msra.mxu0 %v1186
  %1188 = vmatprep.subr.mxu0 0.0
  %v1189 = vand.u32 %v236, 4294901760
  %v1190 = vsub.f32 %v236, %v1189
  %v1191 = vand.u32 %v1190, 4294901760
  %1192 = vmatpush1.msra.mxu0 %v1191
  %1193 = vmatprep.subr.mxu0 0.0
  %v1194 = vand.u32 %v237, 4294901760
  %v1195 = vsub.f32 %v237, %v1194
  %v1196 = vand.u32 %v1195, 4294901760
  %1197 = vmatpush1.msra.mxu0 %v1196
  %1198 = vmatprep.subr.mxu0 0.0
  %v1199 = vand.u32 %v238, 4294901760
  %v1200 = vsub.f32 %v238, %v1199
  %v1201 = vand.u32 %v1200, 4294901760
  %1202 = vmatpush1.msra.mxu0 %v1201
  %1203 = vmatprep.subr.mxu0 0.0
  %v1204 = vand.u32 %v239, 4294901760
  %v1205 = vsub.f32 %v239, %v1204
  %v1206 = vand.u32 %v1205, 4294901760
  %1207 = vmatpush1.msra.mxu0 %v1206
  %1208 = vmatprep.subr.mxu0 0.0
  %v1209 = vand.u32 %v240, 4294901760
  %v1210 = vsub.f32 %v240, %v1209
  %v1211 = vand.u32 %v1210, 4294901760
  %1212 = vmatpush1.msra.mxu0 %v1211
  %1213 = vmatprep.subr.mxu0 0.0
  %v1214 = vand.u32 %v241, 4294901760
  %v1215 = vsub.f32 %v241, %v1214
  %v1216 = vand.u32 %v1215, 4294901760
  %1217 = vmatpush1.msra.mxu0 %v1216
  %1218 = vmatprep.subr.mxu0 0.0
  %v1219 = vand.u32 %v242, 4294901760
  %v1220 = vsub.f32 %v242, %v1219
  %v1221 = vand.u32 %v1220, 4294901760
  %1222 = vmatpush1.msra.mxu0 %v1221
  %1223 = vmatprep.subr.mxu0 0.0
  %1224 = vmatpush1.msra.mxu0 0.0
  %1225 = vmatprep.subr.mxu0 0.0
  %1226 = vmatpush1.msra.mxu0 0.0
  %1227 = vmatprep.subr.mxu0 0.0
  %1228 = vmatpush1.msra.mxu0 0.0
  %1229 = vmatprep.subr.mxu0 0.0
  %1230 = vmatpush1.msra.mxu0 0.0
  %1231 = vmatprep.subr.mxu0 0.0
  %1232 = vmatpush1.msra.mxu0 0.0
  %1233 = vmatprep.subr.mxu0 0.0
  %1234 = vmatpush1.msra.mxu0 0.0
  %1235 = vmatprep.subr.mxu0 0.0
  %1236 = vmatpush1.msra.mxu0 0.0
  %1237 = vmatprep.subr.mxu0 0.0
  %1238 = vmatpush1.msra.mxu0 0.0
  %1239 = vmatprep.subr.mxu0 0.0
  %1240 = vmatpush1.msra.mxu0 0.0
  %1241 = vmatprep.subr.mxu0 0.0
  %1242 = vmatpush1.msra.mxu0 0.0
  %1243 = vmatprep.subr.mxu0 0.0
  %1244 = vmatpush1.msra.mxu0 0.0
  %1245 = vmatprep.subr.mxu0 0.0
  %1246 = vmatpush1.msra.mxu0 0.0
  %1247 = vmatprep.subr.mxu0 0.0
  %1248 = vmatpush1.msra.mxu0 0.0
  %1249 = vmatprep.subr.mxu0 0.0
  %1250 = vmatpush1.msra.mxu0 0.0
  %1251 = vmatprep.subr.mxu0 0.0
  %1252 = vmatpush1.msra.mxu0 0.0
  %1253 = vmatprep.subr.mxu0 0.0
  %1254 = vmatpush1.msra.mxu0 0.0
  %1255 = vmatprep.mubr.f32.mxu0 0.0
  %v1256 = vand.u32 %v115, 4294901760
  %1257 = vmatmul.mubr.f32.gmra.mrb[0].mxu0 %v1256
  %v1258 = vpop.f32.mrb[0].mxu0
  %v1259 = vadd.f32 %v1020, %v1258
  %v1260 = vpop.f32.mrb[0].mxu0
  %1261 = vmatprep.mubr.f32.mxu0 0.0
  %v1262 = vand.u32 %v116, 4294901760
  %1263 = vmatmul.mubr.f32.gmra.mrb[0].mxu0 %v1262
  %v1264 = vpop.f32.mrb[0].mxu0
  %v1265 = vadd.f32 %v1028, %v1264
  %v1266 = vpop.f32.mrb[0].mxu0
  %1267 = vmatprep.mubr.f32.mxu0 0.0
  %v1268 = vand.u32 %v117, 4294901760
  %1269 = vmatmul.mubr.f32.gmra.mrb[0].mxu0 %v1268
  %v1270 = vpop.f32.mrb[0].mxu0
  %v1271 = vadd.f32 %v1036, %v1270
  %v1272 = vpop.f32.mrb[0].mxu0
  %1273 = vmatprep.mubr.f32.mxu0 0.0
  %v1274 = vand.u32 %v118, 4294901760
  %1275 = vmatmul.mubr.f32.gmra.mrb[0].mxu0 %v1274
  %v1276 = vpop.f32.mrb[0].mxu0
  %v1277 = vadd.f32 %v1044, %v1276
  %v1278 = vpop.f32.mrb[0].mxu0
  %1279 = vmatprep.mubr.f32.mxu0 0.0
  %v1280 = vand.u32 %v119, 4294901760
  %1281 = vmatmul.mubr.f32.gmra.mrb[0].mxu0 %v1280
  %v1282 = vpop.f32.mrb[0].mxu0
  %v1283 = vadd.f32 %v1052, %v1282
  %v1284 = vpop.f32.mrb[0].mxu0
  %1285 = vmatprep.mubr.f32.mxu0 0.0
  %v1286 = vand.u32 %v120, 4294901760
  %1287 = vmatmul.mubr.f32.gmra.mrb[0].mxu0 %v1286
  %v1288 = vpop.f32.mrb[0].mxu0
  %v1289 = vadd.f32 %v1060, %v1288
  %v1290 = vpop.f32.mrb[0].mxu0
  %1291 = vmatprep.mubr.f32.mxu0 0.0
  %v1292 = vand.u32 %v121, 4294901760
  %1293 = vmatmul.mubr.f32.gmra.mrb[0].mxu0 %v1292
  %v1294 = vpop.f32.mrb[0].mxu0
  %v1295 = vadd.f32 %v1068, %v1294
  %v1296 = vpop.f32.mrb[0].mxu0
  %1297 = vmatprep.mubr.f32.mxu0 0.0
  %v1298 = vand.u32 %v122, 4294901760
  %1299 = vmatmul.mubr.f32.gmra.mrb[0].mxu0 %v1298
  %v1300 = vpop.f32.mrb[0].mxu0
  %v1301 = vadd.f32 %v1076, %v1300
  %v1302 = vpop.f32.mrb[0].mxu0
  %1303 = vmatprep.mubr.f32.mxu0 0.0
  %v1304 = vand.u32 %v123, 4294901760
  %1305 = vmatmul.mubr.f32.gmra.mrb[0].mxu0 %v1304
  %v1306 = vpop.f32.mrb[0].mxu0
  %v1307 = vadd.f32 %v1084, %v1306
  %v1308 = vpop.f32.mrb[0].mxu0
  %1309 = vmatprep.mubr.f32.mxu0 0.0
  %v1310 = vand.u32 %v124, 4294901760
  %1311 = vmatmul.mubr.f32.gmra.mrb[0].mxu0 %v1310
  %v1312 = vpop.f32.mrb[0].mxu0
  %v1313 = vadd.f32 %v1092, %v1312
  %v1314 = vpop.f32.mrb[0].mxu0
  %1315 = vmatprep.mubr.f32.mxu0 0.0
  %v1316 = vand.u32 %v125, 4294901760
  %1317 = vmatmul.mubr.f32.gmra.mrb[0].mxu0 %v1316
  %v1318 = vpop.f32.mrb[0].mxu0
  %v1319 = vadd.f32 %v1100, %v1318
  %v1320 = vpop.f32.mrb[0].mxu0
  %1321 = vmatprep.mubr.f32.mxu0 0.0
  %v1322 = vand.u32 %v126, 4294901760
  %1323 = vmatmul.mubr.f32.gmra.mrb[0].mxu0 %v1322
  %v1324 = vpop.f32.mrb[0].mxu0
  %v1325 = vadd.f32 %v1108, %v1324
  %v1326 = vpop.f32.mrb[0].mxu0
  %1327 = vmatprep.mubr.f32.mxu0 0.0
  %v1328 = vand.u32 %v127, 4294901760
  %1329 = vmatmul.mubr.f32.gmra.mrb[0].mxu0 %v1328
  %v1330 = vpop.f32.mrb[0].mxu0
  %v1331 = vadd.f32 %v1116, %v1330
  %v1332 = vpop.f32.mrb[0].mxu0
  %1333 = vmatprep.mubr.f32.mxu0 0.0
  %v1334 = vand.u32 %v128, 4294901760
  %1335 = vmatmul.mubr.f32.gmra.mrb[0].mxu0 %v1334
  %v1336 = vpop.f32.mrb[0].mxu0
  %v1337 = vadd.f32 %v1124, %v1336
  %v1338 = vpop.f32.mrb[0].mxu0
  %1339 = vmatprep.mubr.f32.mxu0 0.0
  %v1340 = vand.u32 %v129, 4294901760
  %1341 = vmatmul.mubr.f32.gmra.mrb[0].mxu0 %v1340
  %v1342 = vpop.f32.mrb[0].mxu0
  %v1343 = vadd.f32 %v1132, %v1342
  %v1344 = vpop.f32.mrb[0].mxu0
  %1345 = vmatprep.mubr.f32.mxu0 0.0
  %v1346 = vand.u32 %v130, 4294901760
  %1347 = vmatmul.mubr.f32.gmra.mrb[0].mxu0 %v1346
  %v1348 = vpop.f32.mrb[0].mxu0
  %v1349 = vadd.f32 %v1140, %v1348
  %v1350 = vpop.f32.mrb[0].mxu0
  %1351 = vdwg.mxu0
  %1352 = vmatprep.subr.mxu0 0.0
  %v1353 = vand.u32 %v227, 4294901760
  %1354 = vmatpush1.msra.mxu0 %v1353
  %1355 = vmatprep.subr.mxu0 0.0
  %v1356 = vand.u32 %v228, 4294901760
  %1357 = vmatpush1.msra.mxu0 %v1356
  %1358 = vmatprep.subr.mxu0 0.0
  %v1359 = vand.u32 %v229, 4294901760
  %1360 = vmatpush1.msra.mxu0 %v1359
  %1361 = vmatprep.subr.mxu0 0.0
  %v1362 = vand.u32 %v230, 4294901760
  %1363 = vmatpush1.msra.mxu0 %v1362
  %1364 = vmatprep.subr.mxu0 0.0
  %v1365 = vand.u32 %v231, 4294901760
  %1366 = vmatpush1.msra.mxu0 %v1365
  %1367 = vmatprep.subr.mxu0 0.0
  %v1368 = vand.u32 %v232, 4294901760
  %1369 = vmatpush1.msra.mxu0 %v1368
  %1370 = vmatprep.subr.mxu0 0.0
  %v1371 = vand.u32 %v233, 4294901760
  %1372 = vmatpush1.msra.mxu0 %v1371
  %1373 = vmatprep.subr.mxu0 0.0
  %v1374 = vand.u32 %v234, 4294901760
  %1375 = vmatpush1.msra.mxu0 %v1374
  %1376 = vmatprep.subr.mxu0 0.0
  %v1377 = vand.u32 %v235, 4294901760
  %1378 = vmatpush1.msra.mxu0 %v1377
  %1379 = vmatprep.subr.mxu0 0.0
  %v1380 = vand.u32 %v236, 4294901760
  %1381 = vmatpush1.msra.mxu0 %v1380
  %1382 = vmatprep.subr.mxu0 0.0
  %v1383 = vand.u32 %v237, 4294901760
  %1384 = vmatpush1.msra.mxu0 %v1383
  %1385 = vmatprep.subr.mxu0 0.0
  %v1386 = vand.u32 %v238, 4294901760
  %1387 = vmatpush1.msra.mxu0 %v1386
  %1388 = vmatprep.subr.mxu0 0.0
  %v1389 = vand.u32 %v239, 4294901760
  %1390 = vmatpush1.msra.mxu0 %v1389
  %1391 = vmatprep.subr.mxu0 0.0
  %v1392 = vand.u32 %v240, 4294901760
  %1393 = vmatpush1.msra.mxu0 %v1392
  %1394 = vmatprep.subr.mxu0 0.0
  %v1395 = vand.u32 %v241, 4294901760
  %1396 = vmatpush1.msra.mxu0 %v1395
  %1397 = vmatprep.subr.mxu0 0.0
  %v1398 = vand.u32 %v242, 4294901760
  %1399 = vmatpush1.msra.mxu0 %v1398
  %1400 = vmatprep.subr.mxu0 0.0
  %1401 = vmatpush1.msra.mxu0 0.0
  %1402 = vmatprep.subr.mxu0 0.0
  %1403 = vmatpush1.msra.mxu0 0.0
  %1404 = vmatprep.subr.mxu0 0.0
  %1405 = vmatpush1.msra.mxu0 0.0
  %1406 = vmatprep.subr.mxu0 0.0
  %1407 = vmatpush1.msra.mxu0 0.0
  %1408 = vmatprep.subr.mxu0 0.0
  %1409 = vmatpush1.msra.mxu0 0.0
  %1410 = vmatprep.subr.mxu0 0.0
  %1411 = vmatpush1.msra.mxu0 0.0
  %1412 = vmatprep.subr.mxu0 0.0
  %1413 = vmatpush1.msra.mxu0 0.0
  %1414 = vmatprep.subr.mxu0 0.0
  %1415 = vmatpush1.msra.mxu0 0.0
  %1416 = vmatprep.subr.mxu0 0.0
  %1417 = vmatpush1.msra.mxu0 0.0
  %1418 = vmatprep.subr.mxu0 0.0
  %1419 = vmatpush1.msra.mxu0 0.0
  %1420 = vmatprep.subr.mxu0 0.0
  %1421 = vmatpush1.msra.mxu0 0.0
  %1422 = vmatprep.subr.mxu0 0.0
  %1423 = vmatpush1.msra.mxu0 0.0
  %1424 = vmatprep.subr.mxu0 0.0
  %1425 = vmatpush1.msra.mxu0 0.0
  %1426 = vmatprep.subr.mxu0 0.0
  %1427 = vmatpush1.msra.mxu0 0.0
  %1428 = vmatprep.subr.mxu0 0.0
  %1429 = vmatpush1.msra.mxu0 0.0
  %1430 = vmatprep.subr.mxu0 0.0
  %1431 = vmatpush1.msra.mxu0 0.0
  %1432 = vmatprep.mubr.f32.mxu0 0.0
  %v1433 = vand.u32 %v115, 4294901760
  %1434 = vmatmul.mubr.f32.gmra.mrb[0].mxu0 %v1433
  %v1435 = vpop.f32.mrb[0].mxu0
  %v1436 = vadd.f32 %v1259, %v1435
  %v1437 = vpop.f32.mrb[0].mxu0
  %1438 = vmatprep.mubr.f32.mxu0 0.0
  %v1439 = vand.u32 %v116, 4294901760
  %1440 = vmatmul.mubr.f32.gmra.mrb[0].mxu0 %v1439
  %v1441 = vpop.f32.mrb[0].mxu0
  %v1442 = vadd.f32 %v1265, %v1441
  %v1443 = vpop.f32.mrb[0].mxu0
  %1444 = vmatprep.mubr.f32.mxu0 0.0
  %v1445 = vand.u32 %v117, 4294901760
  %1446 = vmatmul.mubr.f32.gmra.mrb[0].mxu0 %v1445
  %v1447 = vpop.f32.mrb[0].mxu0
  %v1448 = vadd.f32 %v1271, %v1447
  %v1449 = vpop.f32.mrb[0].mxu0
  %1450 = vmatprep.mubr.f32.mxu0 0.0
  %v1451 = vand.u32 %v118, 4294901760
  %1452 = vmatmul.mubr.f32.gmra.mrb[0].mxu0 %v1451
  %v1453 = vpop.f32.mrb[0].mxu0
  %v1454 = vadd.f32 %v1277, %v1453
  %v1455 = vpop.f32.mrb[0].mxu0
  %1456 = vmatprep.mubr.f32.mxu0 0.0
  %v1457 = vand.u32 %v119, 4294901760
  %1458 = vmatmul.mubr.f32.gmra.mrb[0].mxu0 %v1457
  %v1459 = vpop.f32.mrb[0].mxu0
  %v1460 = vadd.f32 %v1283, %v1459
  %v1461 = vpop.f32.mrb[0].mxu0
  %1462 = vmatprep.mubr.f32.mxu0 0.0
  %v1463 = vand.u32 %v120, 4294901760
  %1464 = vmatmul.mubr.f32.gmra.mrb[0].mxu0 %v1463
  %v1465 = vpop.f32.mrb[0].mxu0
  %v1466 = vadd.f32 %v1289, %v1465
  %v1467 = vpop.f32.mrb[0].mxu0
  %1468 = vmatprep.mubr.f32.mxu0 0.0
  %v1469 = vand.u32 %v121, 4294901760
  %1470 = vmatmul.mubr.f32.gmra.mrb[0].mxu0 %v1469
  %v1471 = vpop.f32.mrb[0].mxu0
  %v1472 = vadd.f32 %v1295, %v1471
  %v1473 = vpop.f32.mrb[0].mxu0
  %1474 = vmatprep.mubr.f32.mxu0 0.0
  %v1475 = vand.u32 %v122, 4294901760
  %1476 = vmatmul.mubr.f32.gmra.mrb[0].mxu0 %v1475
  %v1477 = vpop.f32.mrb[0].mxu0
  %v1478 = vadd.f32 %v1301, %v1477
  %v1479 = vpop.f32.mrb[0].mxu0
  %1480 = vmatprep.mubr.f32.mxu0 0.0
  %v1481 = vand.u32 %v123, 4294901760
  %1482 = vmatmul.mubr.f32.gmra.mrb[0].mxu0 %v1481
  %v1483 = vpop.f32.mrb[0].mxu0
  %v1484 = vadd.f32 %v1307, %v1483
  %v1485 = vpop.f32.mrb[0].mxu0
  %1486 = vmatprep.mubr.f32.mxu0 0.0
  %v1487 = vand.u32 %v124, 4294901760
  %1488 = vmatmul.mubr.f32.gmra.mrb[0].mxu0 %v1487
  %v1489 = vpop.f32.mrb[0].mxu0
  %v1490 = vadd.f32 %v1313, %v1489
  %v1491 = vpop.f32.mrb[0].mxu0
  %1492 = vmatprep.mubr.f32.mxu0 0.0
  %v1493 = vand.u32 %v125, 4294901760
  %1494 = vmatmul.mubr.f32.gmra.mrb[0].mxu0 %v1493
  %v1495 = vpop.f32.mrb[0].mxu0
  %v1496 = vadd.f32 %v1319, %v1495
  %v1497 = vpop.f32.mrb[0].mxu0
  %1498 = vmatprep.mubr.f32.mxu0 0.0
  %v1499 = vand.u32 %v126, 4294901760
  %1500 = vmatmul.mubr.f32.gmra.mrb[0].mxu0 %v1499
  %v1501 = vpop.f32.mrb[0].mxu0
  %v1502 = vadd.f32 %v1325, %v1501
  %v1503 = vpop.f32.mrb[0].mxu0
  %1504 = vmatprep.mubr.f32.mxu0 0.0
  %v1505 = vand.u32 %v127, 4294901760
  %1506 = vmatmul.mubr.f32.gmra.mrb[0].mxu0 %v1505
  %v1507 = vpop.f32.mrb[0].mxu0
  %v1508 = vadd.f32 %v1331, %v1507
  %v1509 = vpop.f32.mrb[0].mxu0
  %1510 = vmatprep.mubr.f32.mxu0 0.0
  %v1511 = vand.u32 %v128, 4294901760
  %1512 = vmatmul.mubr.f32.gmra.mrb[0].mxu0 %v1511
  %v1513 = vpop.f32.mrb[0].mxu0
  %v1514 = vadd.f32 %v1337, %v1513
  %v1515 = vpop.f32.mrb[0].mxu0
  %1516 = vmatprep.mubr.f32.mxu0 0.0
  %v1517 = vand.u32 %v129, 4294901760
  %1518 = vmatmul.mubr.f32.gmra.mrb[0].mxu0 %v1517
  %v1519 = vpop.f32.mrb[0].mxu0
  %v1520 = vadd.f32 %v1343, %v1519
  %v1521 = vpop.f32.mrb[0].mxu0
  %1522 = vmatprep.mubr.f32.mxu0 0.0
  %v1523 = vand.u32 %v130, 4294901760
  %1524 = vmatmul.mubr.f32.gmra.mrb[0].mxu0 %v1523
  %v1525 = vpop.f32.mrb[0].mxu0
  %v1526 = vadd.f32 %v1349, %v1525
  %v1527 = vpop.f32.mrb[0].mxu0
  %1528 = vdwg.mxu0
  %v1529 = vld [vmem:[%s2] sm:$0xff]
  %v1530 = vld [vmem:[%s2 + $0x8] sm:$0xff]
  %v1531 = vld [vmem:[%s2 + $0x10] sm:$0xff]
  %v1532 = vld [vmem:[%s2 + $0x18] sm:$0xff]
  %v1533 = vld [vmem:[%s2 + $0x20] sm:$0xff]
  %v1534 = vld [vmem:[%s2 + $0x28] sm:$0xff]
  %v1535 = vld [vmem:[%s2 + $0x30] sm:$0xff]
  %v1536 = vld [vmem:[%s2 + $0x38] sm:$0xff]
  %v1537 = vld [vmem:[%s2 + $0x40] sm:$0xff]
  %v1538 = vld [vmem:[%s2 + $0x48] sm:$0xff]
  %v1539 = vld [vmem:[%s2 + $0x50] sm:$0xff]
  %v1540 = vld [vmem:[%s2 + $0x58] sm:$0xff]
  %v1541 = vld [vmem:[%s2 + $0x60] sm:$0xff]
  %v1542 = vld [vmem:[%s2 + $0x68] sm:$0xff]
  %v1543 = vld [vmem:[%s2 + $0x70] sm:$0xff]
  %v1544 = vld [vmem:[%s2 + $0x78] sm:$0xff]
  %1545 = vmatprep.subr.mxu0 0.0
  %v1546 = vand.u32 %v1529, 4294901760
  %1547 = vmatpush1.msra.mxu0 %v1546
  %1548 = vmatprep.subr.mxu0 0.0
  %v1549 = vand.u32 %v1530, 4294901760
  %1550 = vmatpush1.msra.mxu0 %v1549
  %1551 = vmatprep.subr.mxu0 0.0
  %v1552 = vand.u32 %v1531, 4294901760
  %1553 = vmatpush1.msra.mxu0 %v1552
  %1554 = vmatprep.subr.mxu0 0.0
  %v1555 = vand.u32 %v1532, 4294901760
  %1556 = vmatpush1.msra.mxu0 %v1555
  %1557 = vmatprep.subr.mxu0 0.0
  %v1558 = vand.u32 %v1533, 4294901760
  %1559 = vmatpush1.msra.mxu0 %v1558
  %1560 = vmatprep.subr.mxu0 0.0
  %v1561 = vand.u32 %v1534, 4294901760
  %1562 = vmatpush1.msra.mxu0 %v1561
  %1563 = vmatprep.subr.mxu0 0.0
  %v1564 = vand.u32 %v1535, 4294901760
  %1565 = vmatpush1.msra.mxu0 %v1564
  %1566 = vmatprep.subr.mxu0 0.0
  %v1567 = vand.u32 %v1536, 4294901760
  %1568 = vmatpush1.msra.mxu0 %v1567
  %1569 = vmatprep.subr.mxu0 0.0
  %v1570 = vand.u32 %v1537, 4294901760
  %1571 = vmatpush1.msra.mxu0 %v1570
  %1572 = vmatprep.subr.mxu0 0.0
  %v1573 = vand.u32 %v1538, 4294901760
  %1574 = vmatpush1.msra.mxu0 %v1573
  %1575 = vmatprep.subr.mxu0 0.0
  %v1576 = vand.u32 %v1539, 4294901760
  %1577 = vmatpush1.msra.mxu0 %v1576
  %1578 = vmatprep.subr.mxu0 0.0
  %v1579 = vand.u32 %v1540, 4294901760
  %1580 = vmatpush1.msra.mxu0 %v1579
  %1581 = vmatprep.subr.mxu0 0.0
  %v1582 = vand.u32 %v1541, 4294901760
  %1583 = vmatpush1.msra.mxu0 %v1582
  %1584 = vmatprep.subr.mxu0 0.0
  %v1585 = vand.u32 %v1542, 4294901760
  %1586 = vmatpush1.msra.mxu0 %v1585
  %1587 = vmatprep.subr.mxu0 0.0
  %v1588 = vand.u32 %v1543, 4294901760
  %1589 = vmatpush1.msra.mxu0 %v1588
  %1590 = vmatprep.subr.mxu0 0.0
  %v1591 = vand.u32 %v1544, 4294901760
  %1592 = vmatpush1.msra.mxu0 %v1591
  %1593 = vmatprep.subr.mxu0 0.0
  %1594 = vmatpush1.msra.mxu0 0.0
  %1595 = vmatprep.subr.mxu0 0.0
  %1596 = vmatpush1.msra.mxu0 0.0
  %1597 = vmatprep.subr.mxu0 0.0
  %1598 = vmatpush1.msra.mxu0 0.0
  %1599 = vmatprep.subr.mxu0 0.0
  %1600 = vmatpush1.msra.mxu0 0.0
  %1601 = vmatprep.subr.mxu0 0.0
  %1602 = vmatpush1.msra.mxu0 0.0
  %1603 = vmatprep.subr.mxu0 0.0
  %1604 = vmatpush1.msra.mxu0 0.0
  %1605 = vmatprep.subr.mxu0 0.0
  %1606 = vmatpush1.msra.mxu0 0.0
  %1607 = vmatprep.subr.mxu0 0.0
  %1608 = vmatpush1.msra.mxu0 0.0
  %1609 = vmatprep.subr.mxu0 0.0
  %1610 = vmatpush1.msra.mxu0 0.0
  %1611 = vmatprep.subr.mxu0 0.0
  %1612 = vmatpush1.msra.mxu0 0.0
  %1613 = vmatprep.subr.mxu0 0.0
  %1614 = vmatpush1.msra.mxu0 0.0
  %1615 = vmatprep.subr.mxu0 0.0
  %1616 = vmatpush1.msra.mxu0 0.0
  %1617 = vmatprep.subr.mxu0 0.0
  %1618 = vmatpush1.msra.mxu0 0.0
  %1619 = vmatprep.subr.mxu0 0.0
  %1620 = vmatpush1.msra.mxu0 0.0
  %1621 = vmatprep.subr.mxu0 0.0
  %1622 = vmatpush1.msra.mxu0 0.0
  %1623 = vmatprep.subr.mxu0 0.0
  %1624 = vmatpush1.msra.mxu0 0.0
  %1625 = vmatprep.mubr.f32.mxu0 0.0
  %v1626 = vand.u32 %v211, 4294901760
  %v1627 = vsub.f32 %v211, %v1626
  %v1628 = vand.u32 %v1627, 4294901760
  %v1629 = vsub.f32 %v1627, %v1628
  %v1630 = vand.u32 %v1629, 4294901760
  %1631 = vmatmul.mubr.f32.gmra.mrb[0].mxu0 %v1630
  %v1632 = vpop.f32.mrb[0].mxu0
  %v1633 = vadd.f32 0.0, %v1632
  %v1634 = vpop.f32.mrb[0].mxu0
  %1635 = vmatprep.mubr.f32.mxu0 0.0
  %v1636 = vand.u32 %v212, 4294901760
  %v1637 = vsub.f32 %v212, %v1636
  %v1638 = vand.u32 %v1637, 4294901760
  %v1639 = vsub.f32 %v1637, %v1638
  %v1640 = vand.u32 %v1639, 4294901760
  %1641 = vmatmul.mubr.f32.gmra.mrb[0].mxu0 %v1640
  %v1642 = vpop.f32.mrb[0].mxu0
  %v1643 = vadd.f32 0.0, %v1642
  %v1644 = vpop.f32.mrb[0].mxu0
  %1645 = vmatprep.mubr.f32.mxu0 0.0
  %v1646 = vand.u32 %v213, 4294901760
  %v1647 = vsub.f32 %v213, %v1646
  %v1648 = vand.u32 %v1647, 4294901760
  %v1649 = vsub.f32 %v1647, %v1648
  %v1650 = vand.u32 %v1649, 4294901760
  %1651 = vmatmul.mubr.f32.gmra.mrb[0].mxu0 %v1650
  %v1652 = vpop.f32.mrb[0].mxu0
  %v1653 = vadd.f32 0.0, %v1652
  %v1654 = vpop.f32.mrb[0].mxu0
  %1655 = vmatprep.mubr.f32.mxu0 0.0
  %v1656 = vand.u32 %v214, 4294901760
  %v1657 = vsub.f32 %v214, %v1656
  %v1658 = vand.u32 %v1657, 4294901760
  %v1659 = vsub.f32 %v1657, %v1658
  %v1660 = vand.u32 %v1659, 4294901760
  %1661 = vmatmul.mubr.f32.gmra.mrb[0].mxu0 %v1660
  %v1662 = vpop.f32.mrb[0].mxu0
  %v1663 = vadd.f32 0.0, %v1662
  %v1664 = vpop.f32.mrb[0].mxu0
  %1665 = vmatprep.mubr.f32.mxu0 0.0
  %v1666 = vand.u32 %v215, 4294901760
  %v1667 = vsub.f32 %v215, %v1666
  %v1668 = vand.u32 %v1667, 4294901760
  %v1669 = vsub.f32 %v1667, %v1668
  %v1670 = vand.u32 %v1669, 4294901760
  %1671 = vmatmul.mubr.f32.gmra.mrb[0].mxu0 %v1670
  %v1672 = vpop.f32.mrb[0].mxu0
  %v1673 = vadd.f32 0.0, %v1672
  %v1674 = vpop.f32.mrb[0].mxu0
  %1675 = vmatprep.mubr.f32.mxu0 0.0
  %v1676 = vand.u32 %v216, 4294901760
  %v1677 = vsub.f32 %v216, %v1676
  %v1678 = vand.u32 %v1677, 4294901760
  %v1679 = vsub.f32 %v1677, %v1678
  %v1680 = vand.u32 %v1679, 4294901760
  %1681 = vmatmul.mubr.f32.gmra.mrb[0].mxu0 %v1680
  %v1682 = vpop.f32.mrb[0].mxu0
  %v1683 = vadd.f32 0.0, %v1682
  %v1684 = vpop.f32.mrb[0].mxu0
  %1685 = vmatprep.mubr.f32.mxu0 0.0
  %v1686 = vand.u32 %v217, 4294901760
  %v1687 = vsub.f32 %v217, %v1686
  %v1688 = vand.u32 %v1687, 4294901760
  %v1689 = vsub.f32 %v1687, %v1688
  %v1690 = vand.u32 %v1689, 4294901760
  %1691 = vmatmul.mubr.f32.gmra.mrb[0].mxu0 %v1690
  %v1692 = vpop.f32.mrb[0].mxu0
  %v1693 = vadd.f32 0.0, %v1692
  %v1694 = vpop.f32.mrb[0].mxu0
  %1695 = vmatprep.mubr.f32.mxu0 0.0
  %v1696 = vand.u32 %v218, 4294901760
  %v1697 = vsub.f32 %v218, %v1696
  %v1698 = vand.u32 %v1697, 4294901760
  %v1699 = vsub.f32 %v1697, %v1698
  %v1700 = vand.u32 %v1699, 4294901760
  %1701 = vmatmul.mubr.f32.gmra.mrb[0].mxu0 %v1700
  %v1702 = vpop.f32.mrb[0].mxu0
  %v1703 = vadd.f32 0.0, %v1702
  %v1704 = vpop.f32.mrb[0].mxu0
  %1705 = vmatprep.mubr.f32.mxu0 0.0
  %v1706 = vand.u32 %v219, 4294901760
  %v1707 = vsub.f32 %v219, %v1706
  %v1708 = vand.u32 %v1707, 4294901760
  %v1709 = vsub.f32 %v1707, %v1708
  %v1710 = vand.u32 %v1709, 4294901760
  %1711 = vmatmul.mubr.f32.gmra.mrb[0].mxu0 %v1710
  %v1712 = vpop.f32.mrb[0].mxu0
  %v1713 = vadd.f32 0.0, %v1712
  %v1714 = vpop.f32.mrb[0].mxu0
  %1715 = vmatprep.mubr.f32.mxu0 0.0
  %v1716 = vand.u32 %v220, 4294901760
  %v1717 = vsub.f32 %v220, %v1716
  %v1718 = vand.u32 %v1717, 4294901760
  %v1719 = vsub.f32 %v1717, %v1718
  %v1720 = vand.u32 %v1719, 4294901760
  %1721 = vmatmul.mubr.f32.gmra.mrb[0].mxu0 %v1720
  %v1722 = vpop.f32.mrb[0].mxu0
  %v1723 = vadd.f32 0.0, %v1722
  %v1724 = vpop.f32.mrb[0].mxu0
  %1725 = vmatprep.mubr.f32.mxu0 0.0
  %v1726 = vand.u32 %v221, 4294901760
  %v1727 = vsub.f32 %v221, %v1726
  %v1728 = vand.u32 %v1727, 4294901760
  %v1729 = vsub.f32 %v1727, %v1728
  %v1730 = vand.u32 %v1729, 4294901760
  %1731 = vmatmul.mubr.f32.gmra.mrb[0].mxu0 %v1730
  %v1732 = vpop.f32.mrb[0].mxu0
  %v1733 = vadd.f32 0.0, %v1732
  %v1734 = vpop.f32.mrb[0].mxu0
  %1735 = vmatprep.mubr.f32.mxu0 0.0
  %v1736 = vand.u32 %v222, 4294901760
  %v1737 = vsub.f32 %v222, %v1736
  %v1738 = vand.u32 %v1737, 4294901760
  %v1739 = vsub.f32 %v1737, %v1738
  %v1740 = vand.u32 %v1739, 4294901760
  %1741 = vmatmul.mubr.f32.gmra.mrb[0].mxu0 %v1740
  %v1742 = vpop.f32.mrb[0].mxu0
  %v1743 = vadd.f32 0.0, %v1742
  %v1744 = vpop.f32.mrb[0].mxu0
  %1745 = vmatprep.mubr.f32.mxu0 0.0
  %v1746 = vand.u32 %v223, 4294901760
  %v1747 = vsub.f32 %v223, %v1746
  %v1748 = vand.u32 %v1747, 4294901760
  %v1749 = vsub.f32 %v1747, %v1748
  %v1750 = vand.u32 %v1749, 4294901760
  %1751 = vmatmul.mubr.f32.gmra.mrb[0].mxu0 %v1750
  %v1752 = vpop.f32.mrb[0].mxu0
  %v1753 = vadd.f32 0.0, %v1752
  %v1754 = vpop.f32.mrb[0].mxu0
  %1755 = vmatprep.mubr.f32.mxu0 0.0
  %v1756 = vand.u32 %v224, 4294901760
  %v1757 = vsub.f32 %v224, %v1756
  %v1758 = vand.u32 %v1757, 4294901760
  %v1759 = vsub.f32 %v1757, %v1758
  %v1760 = vand.u32 %v1759, 4294901760
  %1761 = vmatmul.mubr.f32.gmra.mrb[0].mxu0 %v1760
  %v1762 = vpop.f32.mrb[0].mxu0
  %v1763 = vadd.f32 0.0, %v1762
  %v1764 = vpop.f32.mrb[0].mxu0
  %1765 = vmatprep.mubr.f32.mxu0 0.0
  %v1766 = vand.u32 %v225, 4294901760
  %v1767 = vsub.f32 %v225, %v1766
  %v1768 = vand.u32 %v1767, 4294901760
  %v1769 = vsub.f32 %v1767, %v1768
  %v1770 = vand.u32 %v1769, 4294901760
  %1771 = vmatmul.mubr.f32.gmra.mrb[0].mxu0 %v1770
  %v1772 = vpop.f32.mrb[0].mxu0
  %v1773 = vadd.f32 0.0, %v1772
  %v1774 = vpop.f32.mrb[0].mxu0
  %1775 = vmatprep.mubr.f32.mxu0 0.0
  %v1776 = vand.u32 %v226, 4294901760
  %v1777 = vsub.f32 %v226, %v1776
  %v1778 = vand.u32 %v1777, 4294901760
  %v1779 = vsub.f32 %v1777, %v1778
  %v1780 = vand.u32 %v1779, 4294901760
  %1781 = vmatmul.mubr.f32.gmra.mrb[0].mxu0 %v1780
  %v1782 = vpop.f32.mrb[0].mxu0
  %v1783 = vadd.f32 0.0, %v1782
  %v1784 = vpop.f32.mrb[0].mxu0
  %1785 = vdwg.mxu0
  %1786 = vmatprep.subr.mxu0 0.0
  %v1787 = vand.u32 %v1529, 4294901760
  %v1788 = vsub.f32 %v1529, %v1787
  %v1789 = vand.u32 %v1788, 4294901760
  %v1790 = vsub.f32 %v1788, %v1789
  %v1791 = vand.u32 %v1790, 4294901760
  %1792 = vmatpush1.msra.mxu0 %v1791
  %1793 = vmatprep.subr.mxu0 0.0
  %v1794 = vand.u32 %v1530, 4294901760
  %v1795 = vsub.f32 %v1530, %v1794
  %v1796 = vand.u32 %v1795, 4294901760
  %v1797 = vsub.f32 %v1795, %v1796
  %v1798 = vand.u32 %v1797, 4294901760
  %1799 = vmatpush1.msra.mxu0 %v1798
  %1800 = vmatprep.subr.mxu0 0.0
  %v1801 = vand.u32 %v1531, 4294901760
  %v1802 = vsub.f32 %v1531, %v1801
  %v1803 = vand.u32 %v1802, 4294901760
  %v1804 = vsub.f32 %v1802, %v1803
  %v1805 = vand.u32 %v1804, 4294901760
  %1806 = vmatpush1.msra.mxu0 %v1805
  %1807 = vmatprep.subr.mxu0 0.0
  %v1808 = vand.u32 %v1532, 4294901760
  %v1809 = vsub.f32 %v1532, %v1808
  %v1810 = vand.u32 %v1809, 4294901760
  %v1811 = vsub.f32 %v1809, %v1810
  %v1812 = vand.u32 %v1811, 4294901760
  %1813 = vmatpush1.msra.mxu0 %v1812
  %1814 = vmatprep.subr.mxu0 0.0
  %v1815 = vand.u32 %v1533, 4294901760
  %v1816 = vsub.f32 %v1533, %v1815
  %v1817 = vand.u32 %v1816, 4294901760
  %v1818 = vsub.f32 %v1816, %v1817
  %v1819 = vand.u32 %v1818, 4294901760
  %1820 = vmatpush1.msra.mxu0 %v1819
  %1821 = vmatprep.subr.mxu0 0.0
  %v1822 = vand.u32 %v1534, 4294901760
  %v1823 = vsub.f32 %v1534, %v1822
  %v1824 = vand.u32 %v1823, 4294901760
  %v1825 = vsub.f32 %v1823, %v1824
  %v1826 = vand.u32 %v1825, 4294901760
  %1827 = vmatpush1.msra.mxu0 %v1826
  %1828 = vmatprep.subr.mxu0 0.0
  %v1829 = vand.u32 %v1535, 4294901760
  %v1830 = vsub.f32 %v1535, %v1829
  %v1831 = vand.u32 %v1830, 4294901760
  %v1832 = vsub.f32 %v1830, %v1831
  %v1833 = vand.u32 %v1832, 4294901760
  %1834 = vmatpush1.msra.mxu0 %v1833
  %1835 = vmatprep.subr.mxu0 0.0
  %v1836 = vand.u32 %v1536, 4294901760
  %v1837 = vsub.f32 %v1536, %v1836
  %v1838 = vand.u32 %v1837, 4294901760
  %v1839 = vsub.f32 %v1837, %v1838
  %v1840 = vand.u32 %v1839, 4294901760
  %1841 = vmatpush1.msra.mxu0 %v1840
  %1842 = vmatprep.subr.mxu0 0.0
  %v1843 = vand.u32 %v1537, 4294901760
  %v1844 = vsub.f32 %v1537, %v1843
  %v1845 = vand.u32 %v1844, 4294901760
  %v1846 = vsub.f32 %v1844, %v1845
  %v1847 = vand.u32 %v1846, 4294901760
  %1848 = vmatpush1.msra.mxu0 %v1847
  %1849 = vmatprep.subr.mxu0 0.0
  %v1850 = vand.u32 %v1538, 4294901760
  %v1851 = vsub.f32 %v1538, %v1850
  %v1852 = vand.u32 %v1851, 4294901760
  %v1853 = vsub.f32 %v1851, %v1852
  %v1854 = vand.u32 %v1853, 4294901760
  %1855 = vmatpush1.msra.mxu0 %v1854
  %1856 = vmatprep.subr.mxu0 0.0
  %v1857 = vand.u32 %v1539, 4294901760
  %v1858 = vsub.f32 %v1539, %v1857
  %v1859 = vand.u32 %v1858, 4294901760
  %v1860 = vsub.f32 %v1858, %v1859
  %v1861 = vand.u32 %v1860, 4294901760
  %1862 = vmatpush1.msra.mxu0 %v1861
  %1863 = vmatprep.subr.mxu0 0.0
  %v1864 = vand.u32 %v1540, 4294901760
  %v1865 = vsub.f32 %v1540, %v1864
  %v1866 = vand.u32 %v1865, 4294901760
  %v1867 = vsub.f32 %v1865, %v1866
  %v1868 = vand.u32 %v1867, 4294901760
  %1869 = vmatpush1.msra.mxu0 %v1868
  %1870 = vmatprep.subr.mxu0 0.0
  %v1871 = vand.u32 %v1541, 4294901760
  %v1872 = vsub.f32 %v1541, %v1871
  %v1873 = vand.u32 %v1872, 4294901760
  %v1874 = vsub.f32 %v1872, %v1873
  %v1875 = vand.u32 %v1874, 4294901760
  %1876 = vmatpush1.msra.mxu0 %v1875
  %1877 = vmatprep.subr.mxu0 0.0
  %v1878 = vand.u32 %v1542, 4294901760
  %v1879 = vsub.f32 %v1542, %v1878
  %v1880 = vand.u32 %v1879, 4294901760
  %v1881 = vsub.f32 %v1879, %v1880
  %v1882 = vand.u32 %v1881, 4294901760
  %1883 = vmatpush1.msra.mxu0 %v1882
  %1884 = vmatprep.subr.mxu0 0.0
  %v1885 = vand.u32 %v1543, 4294901760
  %v1886 = vsub.f32 %v1543, %v1885
  %v1887 = vand.u32 %v1886, 4294901760
  %v1888 = vsub.f32 %v1886, %v1887
  %v1889 = vand.u32 %v1888, 4294901760
  %1890 = vmatpush1.msra.mxu0 %v1889
  %1891 = vmatprep.subr.mxu0 0.0
  %v1892 = vand.u32 %v1544, 4294901760
  %v1893 = vsub.f32 %v1544, %v1892
  %v1894 = vand.u32 %v1893, 4294901760
  %v1895 = vsub.f32 %v1893, %v1894
  %v1896 = vand.u32 %v1895, 4294901760
  %1897 = vmatpush1.msra.mxu0 %v1896
  %1898 = vmatprep.subr.mxu0 0.0
  %1899 = vmatpush1.msra.mxu0 0.0
  %1900 = vmatprep.subr.mxu0 0.0
  %1901 = vmatpush1.msra.mxu0 0.0
  %1902 = vmatprep.subr.mxu0 0.0
  %1903 = vmatpush1.msra.mxu0 0.0
  %1904 = vmatprep.subr.mxu0 0.0
  %1905 = vmatpush1.msra.mxu0 0.0
  %1906 = vmatprep.subr.mxu0 0.0
  %1907 = vmatpush1.msra.mxu0 0.0
  %1908 = vmatprep.subr.mxu0 0.0
  %1909 = vmatpush1.msra.mxu0 0.0
  %1910 = vmatprep.subr.mxu0 0.0
  %1911 = vmatpush1.msra.mxu0 0.0
  %1912 = vmatprep.subr.mxu0 0.0
  %1913 = vmatpush1.msra.mxu0 0.0
  %1914 = vmatprep.subr.mxu0 0.0
  %1915 = vmatpush1.msra.mxu0 0.0
  %1916 = vmatprep.subr.mxu0 0.0
  %1917 = vmatpush1.msra.mxu0 0.0
  %1918 = vmatprep.subr.mxu0 0.0
  %1919 = vmatpush1.msra.mxu0 0.0
  %1920 = vmatprep.subr.mxu0 0.0
  %1921 = vmatpush1.msra.mxu0 0.0
  %1922 = vmatprep.subr.mxu0 0.0
  %1923 = vmatpush1.msra.mxu0 0.0
  %1924 = vmatprep.subr.mxu0 0.0
  %1925 = vmatpush1.msra.mxu0 0.0
  %1926 = vmatprep.subr.mxu0 0.0
  %1927 = vmatpush1.msra.mxu0 0.0
  %1928 = vmatprep.subr.mxu0 0.0
  %1929 = vmatpush1.msra.mxu0 0.0
  %1930 = vmatprep.mubr.f32.mxu0 0.0
  %v1931 = vand.u32 %v211, 4294901760
  %1932 = vmatmul.mubr.f32.gmra.mrb[0].mxu0 %v1931
  %v1933 = vpop.f32.mrb[0].mxu0
  %v1934 = vadd.f32 %v1633, %v1933
  %v1935 = vpop.f32.mrb[0].mxu0
  %1936 = vmatprep.mubr.f32.mxu0 0.0
  %v1937 = vand.u32 %v212, 4294901760
  %1938 = vmatmul.mubr.f32.gmra.mrb[0].mxu0 %v1937
  %v1939 = vpop.f32.mrb[0].mxu0
  %v1940 = vadd.f32 %v1643, %v1939
  %v1941 = vpop.f32.mrb[0].mxu0
  %1942 = vmatprep.mubr.f32.mxu0 0.0
  %v1943 = vand.u32 %v213, 4294901760
  %1944 = vmatmul.mubr.f32.gmra.mrb[0].mxu0 %v1943
  %v1945 = vpop.f32.mrb[0].mxu0
  %v1946 = vadd.f32 %v1653, %v1945
  %v1947 = vpop.f32.mrb[0].mxu0
  %1948 = vmatprep.mubr.f32.mxu0 0.0
  %v1949 = vand.u32 %v214, 4294901760
  %1950 = vmatmul.mubr.f32.gmra.mrb[0].mxu0 %v1949
  %v1951 = vpop.f32.mrb[0].mxu0
  %v1952 = vadd.f32 %v1663, %v1951
  %v1953 = vpop.f32.mrb[0].mxu0
  %1954 = vmatprep.mubr.f32.mxu0 0.0
  %v1955 = vand.u32 %v215, 4294901760
  %1956 = vmatmul.mubr.f32.gmra.mrb[0].mxu0 %v1955
  %v1957 = vpop.f32.mrb[0].mxu0
  %v1958 = vadd.f32 %v1673, %v1957
  %v1959 = vpop.f32.mrb[0].mxu0
  %1960 = vmatprep.mubr.f32.mxu0 0.0
  %v1961 = vand.u32 %v216, 4294901760
  %1962 = vmatmul.mubr.f32.gmra.mrb[0].mxu0 %v1961
  %v1963 = vpop.f32.mrb[0].mxu0
  %v1964 = vadd.f32 %v1683, %v1963
  %v1965 = vpop.f32.mrb[0].mxu0
  %1966 = vmatprep.mubr.f32.mxu0 0.0
  %v1967 = vand.u32 %v217, 4294901760
  %1968 = vmatmul.mubr.f32.gmra.mrb[0].mxu0 %v1967
  %v1969 = vpop.f32.mrb[0].mxu0
  %v1970 = vadd.f32 %v1693, %v1969
  %v1971 = vpop.f32.mrb[0].mxu0
  %1972 = vmatprep.mubr.f32.mxu0 0.0
  %v1973 = vand.u32 %v218, 4294901760
  %1974 = vmatmul.mubr.f32.gmra.mrb[0].mxu0 %v1973
  %v1975 = vpop.f32.mrb[0].mxu0
  %v1976 = vadd.f32 %v1703, %v1975
  %v1977 = vpop.f32.mrb[0].mxu0
  %1978 = vmatprep.mubr.f32.mxu0 0.0
  %v1979 = vand.u32 %v219, 4294901760
  %1980 = vmatmul.mubr.f32.gmra.mrb[0].mxu0 %v1979
  %v1981 = vpop.f32.mrb[0].mxu0
  %v1982 = vadd.f32 %v1713, %v1981
  %v1983 = vpop.f32.mrb[0].mxu0
  %1984 = vmatprep.mubr.f32.mxu0 0.0
  %v1985 = vand.u32 %v220, 4294901760
  %1986 = vmatmul.mubr.f32.gmra.mrb[0].mxu0 %v1985
  %v1987 = vpop.f32.mrb[0].mxu0
  %v1988 = vadd.f32 %v1723, %v1987
  %v1989 = vpop.f32.mrb[0].mxu0
  %1990 = vmatprep.mubr.f32.mxu0 0.0
  %v1991 = vand.u32 %v221, 4294901760
  %1992 = vmatmul.mubr.f32.gmra.mrb[0].mxu0 %v1991
  %v1993 = vpop.f32.mrb[0].mxu0
  %v1994 = vadd.f32 %v1733, %v1993
  %v1995 = vpop.f32.mrb[0].mxu0
  %1996 = vmatprep.mubr.f32.mxu0 0.0
  %v1997 = vand.u32 %v222, 4294901760
  %1998 = vmatmul.mubr.f32.gmra.mrb[0].mxu0 %v1997
  %v1999 = vpop.f32.mrb[0].mxu0
  %v2000 = vadd.f32 %v1743, %v1999
  %v2001 = vpop.f32.mrb[0].mxu0
  %2002 = vmatprep.mubr.f32.mxu0 0.0
  %v2003 = vand.u32 %v223, 4294901760
  %2004 = vmatmul.mubr.f32.gmra.mrb[0].mxu0 %v2003
  %v2005 = vpop.f32.mrb[0].mxu0
  %v2006 = vadd.f32 %v1753, %v2005
  %v2007 = vpop.f32.mrb[0].mxu0
  %2008 = vmatprep.mubr.f32.mxu0 0.0
  %v2009 = vand.u32 %v224, 4294901760
  %2010 = vmatmul.mubr.f32.gmra.mrb[0].mxu0 %v2009
  %v2011 = vpop.f32.mrb[0].mxu0
  %v2012 = vadd.f32 %v1763, %v2011
  %v2013 = vpop.f32.mrb[0].mxu0
  %2014 = vmatprep.mubr.f32.mxu0 0.0
  %v2015 = vand.u32 %v225, 4294901760
  %2016 = vmatmul.mubr.f32.gmra.mrb[0].mxu0 %v2015
  %v2017 = vpop.f32.mrb[0].mxu0
  %v2018 = vadd.f32 %v1773, %v2017
  %v2019 = vpop.f32.mrb[0].mxu0
  %2020 = vmatprep.mubr.f32.mxu0 0.0
  %v2021 = vand.u32 %v226, 4294901760
  %2022 = vmatmul.mubr.f32.gmra.mrb[0].mxu0 %v2021
  %v2023 = vpop.f32.mrb[0].mxu0
  %v2024 = vadd.f32 %v1783, %v2023
  %v2025 = vpop.f32.mrb[0].mxu0
  %2026 = vdwg.mxu0
  %2027 = vmatprep.subr.mxu0 0.0
  %v2028 = vand.u32 %v1529, 4294901760
  %v2029 = vsub.f32 %v1529, %v2028
  %2030 = vmatpush1.msra.mxu0 %v2029
  %2031 = vmatprep.subr.mxu0 0.0
  %v2032 = vand.u32 %v1530, 4294901760
  %v2033 = vsub.f32 %v1530, %v2032
  %2034 = vmatpush1.msra.mxu0 %v2033
  %2035 = vmatprep.subr.mxu0 0.0
  %v2036 = vand.u32 %v1531, 4294901760
  %v2037 = vsub.f32 %v1531, %v2036
  %2038 = vmatpush1.msra.mxu0 %v2037
  %2039 = vmatprep.subr.mxu0 0.0
  %v2040 = vand.u32 %v1532, 4294901760
  %v2041 = vsub.f32 %v1532, %v2040
  %2042 = vmatpush1.msra.mxu0 %v2041
  %2043 = vmatprep.subr.mxu0 0.0
  %v2044 = vand.u32 %v1533, 4294901760
  %v2045 = vsub.f32 %v1533, %v2044
  %2046 = vmatpush1.msra.mxu0 %v2045
  %2047 = vmatprep.subr.mxu0 0.0
  %v2048 = vand.u32 %v1534, 4294901760
  %v2049 = vsub.f32 %v1534, %v2048
  %2050 = vmatpush1.msra.mxu0 %v2049
  %2051 = vmatprep.subr.mxu0 0.0
  %v2052 = vand.u32 %v1535, 4294901760
  %v2053 = vsub.f32 %v1535, %v2052
  %2054 = vmatpush1.msra.mxu0 %v2053
  %2055 = vmatprep.subr.mxu0 0.0
  %v2056 = vand.u32 %v1536, 4294901760
  %v2057 = vsub.f32 %v1536, %v2056
  %2058 = vmatpush1.msra.mxu0 %v2057
  %2059 = vmatprep.subr.mxu0 0.0
  %v2060 = vand.u32 %v1537, 4294901760
  %v2061 = vsub.f32 %v1537, %v2060
  %2062 = vmatpush1.msra.mxu0 %v2061
  %2063 = vmatprep.subr.mxu0 0.0
  %v2064 = vand.u32 %v1538, 4294901760
  %v2065 = vsub.f32 %v1538, %v2064
  %2066 = vmatpush1.msra.mxu0 %v2065
  %2067 = vmatprep.subr.mxu0 0.0
  %v2068 = vand.u32 %v1539, 4294901760
  %v2069 = vsub.f32 %v1539, %v2068
  %2070 = vmatpush1.msra.mxu0 %v2069
  %2071 = vmatprep.subr.mxu0 0.0
  %v2072 = vand.u32 %v1540, 4294901760
  %v2073 = vsub.f32 %v1540, %v2072
  %2074 = vmatpush1.msra.mxu0 %v2073
  %2075 = vmatprep.subr.mxu0 0.0
  %v2076 = vand.u32 %v1541, 4294901760
  %v2077 = vsub.f32 %v1541, %v2076
  %2078 = vmatpush1.msra.mxu0 %v2077
  %2079 = vmatprep.subr.mxu0 0.0
  %v2080 = vand.u32 %v1542, 4294901760
  %v2081 = vsub.f32 %v1542, %v2080
  %2082 = vmatpush1.msra.mxu0 %v2081
  %2083 = vmatprep.subr.mxu0 0.0
  %v2084 = vand.u32 %v1543, 4294901760
  %v2085 = vsub.f32 %v1543, %v2084
  %2086 = vmatpush1.msra.mxu0 %v2085
  %2087 = vmatprep.subr.mxu0 0.0
  %v2088 = vand.u32 %v1544, 4294901760
  %v2089 = vsub.f32 %v1544, %v2088
  %2090 = vmatpush1.msra.mxu0 %v2089
  %2091 = vmatprep.subr.mxu0 0.0
  %2092 = vmatpush1.msra.mxu0 0.0
  %2093 = vmatprep.subr.mxu0 0.0
  %2094 = vmatpush1.msra.mxu0 0.0
  %2095 = vmatprep.subr.mxu0 0.0
  %2096 = vmatpush1.msra.mxu0 0.0
  %2097 = vmatprep.subr.mxu0 0.0
  %2098 = vmatpush1.msra.mxu0 0.0
  %2099 = vmatprep.subr.mxu0 0.0
  %2100 = vmatpush1.msra.mxu0 0.0
  %2101 = vmatprep.subr.mxu0 0.0
  %2102 = vmatpush1.msra.mxu0 0.0
  %2103 = vmatprep.subr.mxu0 0.0
  %2104 = vmatpush1.msra.mxu0 0.0
  %2105 = vmatprep.subr.mxu0 0.0
  %2106 = vmatpush1.msra.mxu0 0.0
  %2107 = vmatprep.subr.mxu0 0.0
  %2108 = vmatpush1.msra.mxu0 0.0
  %2109 = vmatprep.subr.mxu0 0.0
  %2110 = vmatpush1.msra.mxu0 0.0
  %2111 = vmatprep.subr.mxu0 0.0
  %2112 = vmatpush1.msra.mxu0 0.0
  %2113 = vmatprep.subr.mxu0 0.0
  %2114 = vmatpush1.msra.mxu0 0.0
  %2115 = vmatprep.subr.mxu0 0.0
  %2116 = vmatpush1.msra.mxu0 0.0
  %2117 = vmatprep.subr.mxu0 0.0
  %2118 = vmatpush1.msra.mxu0 0.0
  %2119 = vmatprep.subr.mxu0 0.0
  %2120 = vmatpush1.msra.mxu0 0.0
  %2121 = vmatprep.subr.mxu0 0.0
  %2122 = vmatpush1.msra.mxu0 0.0
  %2123 = vmatprep.mubr.f32.mxu0 0.0
  %v2124 = vand.u32 %v211, 4294901760
  %v2125 = vsub.f32 %v211, %v2124
  %2126 = vmatmul.mubr.f32.gmra.mrb[0].mxu0 %v2125
  %v2127 = vpop.f32.mrb[0].mxu0
  %v2128 = vadd.f32 %v1934, %v2127
  %v2129 = vpop.f32.mrb[0].mxu0
  %2130 = vmatprep.mubr.f32.mxu0 0.0
  %v2131 = vand.u32 %v212, 4294901760
  %v2132 = vsub.f32 %v212, %v2131
  %2133 = vmatmul.mubr.f32.gmra.mrb[0].mxu0 %v2132
  %v2134 = vpop.f32.mrb[0].mxu0
  %v2135 = vadd.f32 %v1940, %v2134
  %v2136 = vpop.f32.mrb[0].mxu0
  %2137 = vmatprep.mubr.f32.mxu0 0.0
  %v2138 = vand.u32 %v213, 4294901760
  %v2139 = vsub.f32 %v213, %v2138
  %2140 = vmatmul.mubr.f32.gmra.mrb[0].mxu0 %v2139
  %v2141 = vpop.f32.mrb[0].mxu0
  %v2142 = vadd.f32 %v1946, %v2141
  %v2143 = vpop.f32.mrb[0].mxu0
  %2144 = vmatprep.mubr.f32.mxu0 0.0
  %v2145 = vand.u32 %v214, 4294901760
  %v2146 = vsub.f32 %v214, %v2145
  %2147 = vmatmul.mubr.f32.gmra.mrb[0].mxu0 %v2146
  %v2148 = vpop.f32.mrb[0].mxu0
  %v2149 = vadd.f32 %v1952, %v2148
  %v2150 = vpop.f32.mrb[0].mxu0
  %2151 = vmatprep.mubr.f32.mxu0 0.0
  %v2152 = vand.u32 %v215, 4294901760
  %v2153 = vsub.f32 %v215, %v2152
  %2154 = vmatmul.mubr.f32.gmra.mrb[0].mxu0 %v2153
  %v2155 = vpop.f32.mrb[0].mxu0
  %v2156 = vadd.f32 %v1958, %v2155
  %v2157 = vpop.f32.mrb[0].mxu0
  %2158 = vmatprep.mubr.f32.mxu0 0.0
  %v2159 = vand.u32 %v216, 4294901760
  %v2160 = vsub.f32 %v216, %v2159
  %2161 = vmatmul.mubr.f32.gmra.mrb[0].mxu0 %v2160
  %v2162 = vpop.f32.mrb[0].mxu0
  %v2163 = vadd.f32 %v1964, %v2162
  %v2164 = vpop.f32.mrb[0].mxu0
  %2165 = vmatprep.mubr.f32.mxu0 0.0
  %v2166 = vand.u32 %v217, 4294901760
  %v2167 = vsub.f32 %v217, %v2166
  %2168 = vmatmul.mubr.f32.gmra.mrb[0].mxu0 %v2167
  %v2169 = vpop.f32.mrb[0].mxu0
  %v2170 = vadd.f32 %v1970, %v2169
  %v2171 = vpop.f32.mrb[0].mxu0
  %2172 = vmatprep.mubr.f32.mxu0 0.0
  %v2173 = vand.u32 %v218, 4294901760
  %v2174 = vsub.f32 %v218, %v2173
  %2175 = vmatmul.mubr.f32.gmra.mrb[0].mxu0 %v2174
  %v2176 = vpop.f32.mrb[0].mxu0
  %v2177 = vadd.f32 %v1976, %v2176
  %v2178 = vpop.f32.mrb[0].mxu0
  %2179 = vmatprep.mubr.f32.mxu0 0.0
  %v2180 = vand.u32 %v219, 4294901760
  %v2181 = vsub.f32 %v219, %v2180
  %2182 = vmatmul.mubr.f32.gmra.mrb[0].mxu0 %v2181
  %v2183 = vpop.f32.mrb[0].mxu0
  %v2184 = vadd.f32 %v1982, %v2183
  %v2185 = vpop.f32.mrb[0].mxu0
  %2186 = vmatprep.mubr.f32.mxu0 0.0
  %v2187 = vand.u32 %v220, 4294901760
  %v2188 = vsub.f32 %v220, %v2187
  %2189 = vmatmul.mubr.f32.gmra.mrb[0].mxu0 %v2188
  %v2190 = vpop.f32.mrb[0].mxu0
  %v2191 = vadd.f32 %v1988, %v2190
  %v2192 = vpop.f32.mrb[0].mxu0
  %2193 = vmatprep.mubr.f32.mxu0 0.0
  %v2194 = vand.u32 %v221, 4294901760
  %v2195 = vsub.f32 %v221, %v2194
  %2196 = vmatmul.mubr.f32.gmra.mrb[0].mxu0 %v2195
  %v2197 = vpop.f32.mrb[0].mxu0
  %v2198 = vadd.f32 %v1994, %v2197
  %v2199 = vpop.f32.mrb[0].mxu0
  %2200 = vmatprep.mubr.f32.mxu0 0.0
  %v2201 = vand.u32 %v222, 4294901760
  %v2202 = vsub.f32 %v222, %v2201
  %2203 = vmatmul.mubr.f32.gmra.mrb[0].mxu0 %v2202
  %v2204 = vpop.f32.mrb[0].mxu0
  %v2205 = vadd.f32 %v2000, %v2204
  %v2206 = vpop.f32.mrb[0].mxu0
  %2207 = vmatprep.mubr.f32.mxu0 0.0
  %v2208 = vand.u32 %v223, 4294901760
  %v2209 = vsub.f32 %v223, %v2208
  %2210 = vmatmul.mubr.f32.gmra.mrb[0].mxu0 %v2209
  %v2211 = vpop.f32.mrb[0].mxu0
  %v2212 = vadd.f32 %v2006, %v2211
  %v2213 = vpop.f32.mrb[0].mxu0
  %2214 = vmatprep.mubr.f32.mxu0 0.0
  %v2215 = vand.u32 %v224, 4294901760
  %v2216 = vsub.f32 %v224, %v2215
  %2217 = vmatmul.mubr.f32.gmra.mrb[0].mxu0 %v2216
  %v2218 = vpop.f32.mrb[0].mxu0
  %v2219 = vadd.f32 %v2012, %v2218
  %v2220 = vpop.f32.mrb[0].mxu0
  %2221 = vmatprep.mubr.f32.mxu0 0.0
  %v2222 = vand.u32 %v225, 4294901760
  %v2223 = vsub.f32 %v225, %v2222
  %2224 = vmatmul.mubr.f32.gmra.mrb[0].mxu0 %v2223
  %v2225 = vpop.f32.mrb[0].mxu0
  %v2226 = vadd.f32 %v2018, %v2225
  %v2227 = vpop.f32.mrb[0].mxu0
  %2228 = vmatprep.mubr.f32.mxu0 0.0
  %v2229 = vand.u32 %v226, 4294901760
  %v2230 = vsub.f32 %v226, %v2229
  %2231 = vmatmul.mubr.f32.gmra.mrb[0].mxu0 %v2230
  %v2232 = vpop.f32.mrb[0].mxu0
  %v2233 = vadd.f32 %v2024, %v2232
  %v2234 = vpop.f32.mrb[0].mxu0
  %2235 = vdwg.mxu0
  %2236 = vmatprep.subr.mxu0 0.0
  %v2237 = vand.u32 %v1529, 4294901760
  %2238 = vmatpush1.msra.mxu0 %v2237
  %2239 = vmatprep.subr.mxu0 0.0
  %v2240 = vand.u32 %v1530, 4294901760
  %2241 = vmatpush1.msra.mxu0 %v2240
  %2242 = vmatprep.subr.mxu0 0.0
  %v2243 = vand.u32 %v1531, 4294901760
  %2244 = vmatpush1.msra.mxu0 %v2243
  %2245 = vmatprep.subr.mxu0 0.0
  %v2246 = vand.u32 %v1532, 4294901760
  %2247 = vmatpush1.msra.mxu0 %v2246
  %2248 = vmatprep.subr.mxu0 0.0
  %v2249 = vand.u32 %v1533, 4294901760
  %2250 = vmatpush1.msra.mxu0 %v2249
  %2251 = vmatprep.subr.mxu0 0.0
  %v2252 = vand.u32 %v1534, 4294901760
  %2253 = vmatpush1.msra.mxu0 %v2252
  %2254 = vmatprep.subr.mxu0 0.0
  %v2255 = vand.u32 %v1535, 4294901760
  %2256 = vmatpush1.msra.mxu0 %v2255
  %2257 = vmatprep.subr.mxu0 0.0
  %v2258 = vand.u32 %v1536, 4294901760
  %2259 = vmatpush1.msra.mxu0 %v2258
  %2260 = vmatprep.subr.mxu0 0.0
  %v2261 = vand.u32 %v1537, 4294901760
  %2262 = vmatpush1.msra.mxu0 %v2261
  %2263 = vmatprep.subr.mxu0 0.0
  %v2264 = vand.u32 %v1538, 4294901760
  %2265 = vmatpush1.msra.mxu0 %v2264
  %2266 = vmatprep.subr.mxu0 0.0
  %v2267 = vand.u32 %v1539, 4294901760
  %2268 = vmatpush1.msra.mxu0 %v2267
  %2269 = vmatprep.subr.mxu0 0.0
  %v2270 = vand.u32 %v1540, 4294901760
  %2271 = vmatpush1.msra.mxu0 %v2270
  %2272 = vmatprep.subr.mxu0 0.0
  %v2273 = vand.u32 %v1541, 4294901760
  %2274 = vmatpush1.msra.mxu0 %v2273
  %2275 = vmatprep.subr.mxu0 0.0
  %v2276 = vand.u32 %v1542, 4294901760
  %2277 = vmatpush1.msra.mxu0 %v2276
  %2278 = vmatprep.subr.mxu0 0.0
  %v2279 = vand.u32 %v1543, 4294901760
  %2280 = vmatpush1.msra.mxu0 %v2279
  %2281 = vmatprep.subr.mxu0 0.0
  %v2282 = vand.u32 %v1544, 4294901760
  %2283 = vmatpush1.msra.mxu0 %v2282
  %2284 = vmatprep.subr.mxu0 0.0
  %2285 = vmatpush1.msra.mxu0 0.0
  %2286 = vmatprep.subr.mxu0 0.0
  %2287 = vmatpush1.msra.mxu0 0.0
  %2288 = vmatprep.subr.mxu0 0.0
  %2289 = vmatpush1.msra.mxu0 0.0
  %2290 = vmatprep.subr.mxu0 0.0
  %2291 = vmatpush1.msra.mxu0 0.0
  %2292 = vmatprep.subr.mxu0 0.0
  %2293 = vmatpush1.msra.mxu0 0.0
  %2294 = vmatprep.subr.mxu0 0.0
  %2295 = vmatpush1.msra.mxu0 0.0
  %2296 = vmatprep.subr.mxu0 0.0
  %2297 = vmatpush1.msra.mxu0 0.0
  %2298 = vmatprep.subr.mxu0 0.0
  %2299 = vmatpush1.msra.mxu0 0.0
  %2300 = vmatprep.subr.mxu0 0.0
  %2301 = vmatpush1.msra.mxu0 0.0
  %2302 = vmatprep.subr.mxu0 0.0
  %2303 = vmatpush1.msra.mxu0 0.0
  %2304 = vmatprep.subr.mxu0 0.0
  %2305 = vmatpush1.msra.mxu0 0.0
  %2306 = vmatprep.subr.mxu0 0.0
  %2307 = vmatpush1.msra.mxu0 0.0
  %2308 = vmatprep.subr.mxu0 0.0
  %2309 = vmatpush1.msra.mxu0 0.0
  %2310 = vmatprep.subr.mxu0 0.0
  %2311 = vmatpush1.msra.mxu0 0.0
  %2312 = vmatprep.subr.mxu0 0.0
  %2313 = vmatpush1.msra.mxu0 0.0
  %2314 = vmatprep.subr.mxu0 0.0
  %2315 = vmatpush1.msra.mxu0 0.0
  %2316 = vmatprep.mubr.f32.mxu0 0.0
  %v2317 = vand.u32 %v211, 4294901760
  %v2318 = vsub.f32 %v211, %v2317
  %v2319 = vand.u32 %v2318, 4294901760
  %2320 = vmatmul.mubr.f32.gmra.mrb[0].mxu0 %v2319
  %v2321 = vpop.f32.mrb[0].mxu0
  %v2322 = vadd.f32 %v2128, %v2321
  %v2323 = vpop.f32.mrb[0].mxu0
  %2324 = vmatprep.mubr.f32.mxu0 0.0
  %v2325 = vand.u32 %v212, 4294901760
  %v2326 = vsub.f32 %v212, %v2325
  %v2327 = vand.u32 %v2326, 4294901760
  %2328 = vmatmul.mubr.f32.gmra.mrb[0].mxu0 %v2327
  %v2329 = vpop.f32.mrb[0].mxu0
  %v2330 = vadd.f32 %v2135, %v2329
  %v2331 = vpop.f32.mrb[0].mxu0
  %2332 = vmatprep.mubr.f32.mxu0 0.0
  %v2333 = vand.u32 %v213, 4294901760
  %v2334 = vsub.f32 %v213, %v2333
  %v2335 = vand.u32 %v2334, 4294901760
  %2336 = vmatmul.mubr.f32.gmra.mrb[0].mxu0 %v2335
  %v2337 = vpop.f32.mrb[0].mxu0
  %v2338 = vadd.f32 %v2142, %v2337
  %v2339 = vpop.f32.mrb[0].mxu0
  %2340 = vmatprep.mubr.f32.mxu0 0.0
  %v2341 = vand.u32 %v214, 4294901760
  %v2342 = vsub.f32 %v214, %v2341
  %v2343 = vand.u32 %v2342, 4294901760
  %2344 = vmatmul.mubr.f32.gmra.mrb[0].mxu0 %v2343
  %v2345 = vpop.f32.mrb[0].mxu0
  %v2346 = vadd.f32 %v2149, %v2345
  %v2347 = vpop.f32.mrb[0].mxu0
  %2348 = vmatprep.mubr.f32.mxu0 0.0
  %v2349 = vand.u32 %v215, 4294901760
  %v2350 = vsub.f32 %v215, %v2349
  %v2351 = vand.u32 %v2350, 4294901760
  %2352 = vmatmul.mubr.f32.gmra.mrb[0].mxu0 %v2351
  %v2353 = vpop.f32.mrb[0].mxu0
  %v2354 = vadd.f32 %v2156, %v2353
  %v2355 = vpop.f32.mrb[0].mxu0
  %2356 = vmatprep.mubr.f32.mxu0 0.0
  %v2357 = vand.u32 %v216, 4294901760
  %v2358 = vsub.f32 %v216, %v2357
  %v2359 = vand.u32 %v2358, 4294901760
  %2360 = vmatmul.mubr.f32.gmra.mrb[0].mxu0 %v2359
  %v2361 = vpop.f32.mrb[0].mxu0
  %v2362 = vadd.f32 %v2163, %v2361
  %v2363 = vpop.f32.mrb[0].mxu0
  %2364 = vmatprep.mubr.f32.mxu0 0.0
  %v2365 = vand.u32 %v217, 4294901760
  %v2366 = vsub.f32 %v217, %v2365
  %v2367 = vand.u32 %v2366, 4294901760
  %2368 = vmatmul.mubr.f32.gmra.mrb[0].mxu0 %v2367
  %v2369 = vpop.f32.mrb[0].mxu0
  %v2370 = vadd.f32 %v2170, %v2369
  %v2371 = vpop.f32.mrb[0].mxu0
  %2372 = vmatprep.mubr.f32.mxu0 0.0
  %v2373 = vand.u32 %v218, 4294901760
  %v2374 = vsub.f32 %v218, %v2373
  %v2375 = vand.u32 %v2374, 4294901760
  %2376 = vmatmul.mubr.f32.gmra.mrb[0].mxu0 %v2375
  %v2377 = vpop.f32.mrb[0].mxu0
  %v2378 = vadd.f32 %v2177, %v2377
  %v2379 = vpop.f32.mrb[0].mxu0
  %2380 = vmatprep.mubr.f32.mxu0 0.0
  %v2381 = vand.u32 %v219, 4294901760
  %v2382 = vsub.f32 %v219, %v2381
  %v2383 = vand.u32 %v2382, 4294901760
  %2384 = vmatmul.mubr.f32.gmra.mrb[0].mxu0 %v2383
  %v2385 = vpop.f32.mrb[0].mxu0
  %v2386 = vadd.f32 %v2184, %v2385
  %v2387 = vpop.f32.mrb[0].mxu0
  %2388 = vmatprep.mubr.f32.mxu0 0.0
  %v2389 = vand.u32 %v220, 4294901760
  %v2390 = vsub.f32 %v220, %v2389
  %v2391 = vand.u32 %v2390, 4294901760
  %2392 = vmatmul.mubr.f32.gmra.mrb[0].mxu0 %v2391
  %v2393 = vpop.f32.mrb[0].mxu0
  %v2394 = vadd.f32 %v2191, %v2393
  %v2395 = vpop.f32.mrb[0].mxu0
  %2396 = vmatprep.mubr.f32.mxu0 0.0
  %v2397 = vand.u32 %v221, 4294901760
  %v2398 = vsub.f32 %v221, %v2397
  %v2399 = vand.u32 %v2398, 4294901760
  %2400 = vmatmul.mubr.f32.gmra.mrb[0].mxu0 %v2399
  %v2401 = vpop.f32.mrb[0].mxu0
  %v2402 = vadd.f32 %v2198, %v2401
  %v2403 = vpop.f32.mrb[0].mxu0
  %2404 = vmatprep.mubr.f32.mxu0 0.0
  %v2405 = vand.u32 %v222, 4294901760
  %v2406 = vsub.f32 %v222, %v2405
  %v2407 = vand.u32 %v2406, 4294901760
  %2408 = vmatmul.mubr.f32.gmra.mrb[0].mxu0 %v2407
  %v2409 = vpop.f32.mrb[0].mxu0
  %v2410 = vadd.f32 %v2205, %v2409
  %v2411 = vpop.f32.mrb[0].mxu0
  %2412 = vmatprep.mubr.f32.mxu0 0.0
  %v2413 = vand.u32 %v223, 4294901760
  %v2414 = vsub.f32 %v223, %v2413
  %v2415 = vand.u32 %v2414, 4294901760
  %2416 = vmatmul.mubr.f32.gmra.mrb[0].mxu0 %v2415
  %v2417 = vpop.f32.mrb[0].mxu0
  %v2418 = vadd.f32 %v2212, %v2417
  %v2419 = vpop.f32.mrb[0].mxu0
  %2420 = vmatprep.mubr.f32.mxu0 0.0
  %v2421 = vand.u32 %v224, 4294901760
  %v2422 = vsub.f32 %v224, %v2421
  %v2423 = vand.u32 %v2422, 4294901760
  %2424 = vmatmul.mubr.f32.gmra.mrb[0].mxu0 %v2423
  %v2425 = vpop.f32.mrb[0].mxu0
  %v2426 = vadd.f32 %v2219, %v2425
  %v2427 = vpop.f32.mrb[0].mxu0
  %2428 = vmatprep.mubr.f32.mxu0 0.0
  %v2429 = vand.u32 %v225, 4294901760
  %v2430 = vsub.f32 %v225, %v2429
  %v2431 = vand.u32 %v2430, 4294901760
  %2432 = vmatmul.mubr.f32.gmra.mrb[0].mxu0 %v2431
  %v2433 = vpop.f32.mrb[0].mxu0
  %v2434 = vadd.f32 %v2226, %v2433
  %v2435 = vpop.f32.mrb[0].mxu0
  %2436 = vmatprep.mubr.f32.mxu0 0.0
  %v2437 = vand.u32 %v226, 4294901760
  %v2438 = vsub.f32 %v226, %v2437
  %v2439 = vand.u32 %v2438, 4294901760
  %2440 = vmatmul.mubr.f32.gmra.mrb[0].mxu0 %v2439
  %v2441 = vpop.f32.mrb[0].mxu0
  %v2442 = vadd.f32 %v2233, %v2441
  %v2443 = vpop.f32.mrb[0].mxu0
  %2444 = vdwg.mxu0
  %2445 = vmatprep.subr.mxu0 0.0
  %v2446 = vand.u32 %v1529, 4294901760
  %v2447 = vsub.f32 %v1529, %v2446
  %v2448 = vand.u32 %v2447, 4294901760
  %2449 = vmatpush1.msra.mxu0 %v2448
  %2450 = vmatprep.subr.mxu0 0.0
  %v2451 = vand.u32 %v1530, 4294901760
  %v2452 = vsub.f32 %v1530, %v2451
  %v2453 = vand.u32 %v2452, 4294901760
  %2454 = vmatpush1.msra.mxu0 %v2453
  %2455 = vmatprep.subr.mxu0 0.0
  %v2456 = vand.u32 %v1531, 4294901760
  %v2457 = vsub.f32 %v1531, %v2456
  %v2458 = vand.u32 %v2457, 4294901760
  %2459 = vmatpush1.msra.mxu0 %v2458
  %2460 = vmatprep.subr.mxu0 0.0
  %v2461 = vand.u32 %v1532, 4294901760
  %v2462 = vsub.f32 %v1532, %v2461
  %v2463 = vand.u32 %v2462, 4294901760
  %2464 = vmatpush1.msra.mxu0 %v2463
  %2465 = vmatprep.subr.mxu0 0.0
  %v2466 = vand.u32 %v1533, 4294901760
  %v2467 = vsub.f32 %v1533, %v2466
  %v2468 = vand.u32 %v2467, 4294901760
  %2469 = vmatpush1.msra.mxu0 %v2468
  %2470 = vmatprep.subr.mxu0 0.0
  %v2471 = vand.u32 %v1534, 4294901760
  %v2472 = vsub.f32 %v1534, %v2471
  %v2473 = vand.u32 %v2472, 4294901760
  %2474 = vmatpush1.msra.mxu0 %v2473
  %2475 = vmatprep.subr.mxu0 0.0
  %v2476 = vand.u32 %v1535, 4294901760
  %v2477 = vsub.f32 %v1535, %v2476
  %v2478 = vand.u32 %v2477, 4294901760
  %2479 = vmatpush1.msra.mxu0 %v2478
  %2480 = vmatprep.subr.mxu0 0.0
  %v2481 = vand.u32 %v1536, 4294901760
  %v2482 = vsub.f32 %v1536, %v2481
  %v2483 = vand.u32 %v2482, 4294901760
  %2484 = vmatpush1.msra.mxu0 %v2483
  %2485 = vmatprep.subr.mxu0 0.0
  %v2486 = vand.u32 %v1537, 4294901760
  %v2487 = vsub.f32 %v1537, %v2486
  %v2488 = vand.u32 %v2487, 4294901760
  %2489 = vmatpush1.msra.mxu0 %v2488
  %2490 = vmatprep.subr.mxu0 0.0
  %v2491 = vand.u32 %v1538, 4294901760
  %v2492 = vsub.f32 %v1538, %v2491
  %v2493 = vand.u32 %v2492, 4294901760
  %2494 = vmatpush1.msra.mxu0 %v2493
  %2495 = vmatprep.subr.mxu0 0.0
  %v2496 = vand.u32 %v1539, 4294901760
  %v2497 = vsub.f32 %v1539, %v2496
  %v2498 = vand.u32 %v2497, 4294901760
  %2499 = vmatpush1.msra.mxu0 %v2498
  %2500 = vmatprep.subr.mxu0 0.0
  %v2501 = vand.u32 %v1540, 4294901760
  %v2502 = vsub.f32 %v1540, %v2501
  %v2503 = vand.u32 %v2502, 4294901760
  %2504 = vmatpush1.msra.mxu0 %v2503
  %2505 = vmatprep.subr.mxu0 0.0
  %v2506 = vand.u32 %v1541, 4294901760
  %v2507 = vsub.f32 %v1541, %v2506
  %v2508 = vand.u32 %v2507, 4294901760
  %2509 = vmatpush1.msra.mxu0 %v2508
  %2510 = vmatprep.subr.mxu0 0.0
  %v2511 = vand.u32 %v1542, 4294901760
  %v2512 = vsub.f32 %v1542, %v2511
  %v2513 = vand.u32 %v2512, 4294901760
  %2514 = vmatpush1.msra.mxu0 %v2513
  %2515 = vmatprep.subr.mxu0 0.0
  %v2516 = vand.u32 %v1543, 4294901760
  %v2517 = vsub.f32 %v1543, %v2516
  %v2518 = vand.u32 %v2517, 4294901760
  %2519 = vmatpush1.msra.mxu0 %v2518
  %2520 = vmatprep.subr.mxu0 0.0
  %v2521 = vand.u32 %v1544, 4294901760
  %v2522 = vsub.f32 %v1544, %v2521
  %v2523 = vand.u32 %v2522, 4294901760
  %2524 = vmatpush1.msra.mxu0 %v2523
  %2525 = vmatprep.subr.mxu0 0.0
  %2526 = vmatpush1.msra.mxu0 0.0
  %2527 = vmatprep.subr.mxu0 0.0
  %2528 = vmatpush1.msra.mxu0 0.0
  %2529 = vmatprep.subr.mxu0 0.0
  %2530 = vmatpush1.msra.mxu0 0.0
  %2531 = vmatprep.subr.mxu0 0.0
  %2532 = vmatpush1.msra.mxu0 0.0
  %2533 = vmatprep.subr.mxu0 0.0
  %2534 = vmatpush1.msra.mxu0 0.0
  %2535 = vmatprep.subr.mxu0 0.0
  %2536 = vmatpush1.msra.mxu0 0.0
  %2537 = vmatprep.subr.mxu0 0.0
  %2538 = vmatpush1.msra.mxu0 0.0
  %2539 = vmatprep.subr.mxu0 0.0
  %2540 = vmatpush1.msra.mxu0 0.0
  %2541 = vmatprep.subr.mxu0 0.0
  %2542 = vmatpush1.msra.mxu0 0.0
  %2543 = vmatprep.subr.mxu0 0.0
  %2544 = vmatpush1.msra.mxu0 0.0
  %2545 = vmatprep.subr.mxu0 0.0
  %2546 = vmatpush1.msra.mxu0 0.0
  %2547 = vmatprep.subr.mxu0 0.0
  %2548 = vmatpush1.msra.mxu0 0.0
  %2549 = vmatprep.subr.mxu0 0.0
  %2550 = vmatpush1.msra.mxu0 0.0
  %2551 = vmatprep.subr.mxu0 0.0
  %2552 = vmatpush1.msra.mxu0 0.0
  %2553 = vmatprep.subr.mxu0 0.0
  %2554 = vmatpush1.msra.mxu0 0.0
  %2555 = vmatprep.subr.mxu0 0.0
  %2556 = vmatpush1.msra.mxu0 0.0
  %2557 = vmatprep.mubr.f32.mxu0 0.0
  %v2558 = vand.u32 %v211, 4294901760
  %2559 = vmatmul.mubr.f32.gmra.mrb[0].mxu0 %v2558
  %v2560 = vpop.f32.mrb[0].mxu0
  %v2561 = vadd.f32 %v2322, %v2560
  %v2562 = vpop.f32.mrb[0].mxu0
  %2563 = vmatprep.mubr.f32.mxu0 0.0
  %v2564 = vand.u32 %v212, 4294901760
  %2565 = vmatmul.mubr.f32.gmra.mrb[0].mxu0 %v2564
  %v2566 = vpop.f32.mrb[0].mxu0
  %v2567 = vadd.f32 %v2330, %v2566
  %v2568 = vpop.f32.mrb[0].mxu0
  %2569 = vmatprep.mubr.f32.mxu0 0.0
  %v2570 = vand.u32 %v213, 4294901760
  %2571 = vmatmul.mubr.f32.gmra.mrb[0].mxu0 %v2570
  %v2572 = vpop.f32.mrb[0].mxu0
  %v2573 = vadd.f32 %v2338, %v2572
  %v2574 = vpop.f32.mrb[0].mxu0
  %2575 = vmatprep.mubr.f32.mxu0 0.0
  %v2576 = vand.u32 %v214, 4294901760
  %2577 = vmatmul.mubr.f32.gmra.mrb[0].mxu0 %v2576
  %v2578 = vpop.f32.mrb[0].mxu0
  %v2579 = vadd.f32 %v2346, %v2578
  %v2580 = vpop.f32.mrb[0].mxu0
  %2581 = vmatprep.mubr.f32.mxu0 0.0
  %v2582 = vand.u32 %v215, 4294901760
  %2583 = vmatmul.mubr.f32.gmra.mrb[0].mxu0 %v2582
  %v2584 = vpop.f32.mrb[0].mxu0
  %v2585 = vadd.f32 %v2354, %v2584
  %v2586 = vpop.f32.mrb[0].mxu0
  %2587 = vmatprep.mubr.f32.mxu0 0.0
  %v2588 = vand.u32 %v216, 4294901760
  %2589 = vmatmul.mubr.f32.gmra.mrb[0].mxu0 %v2588
  %v2590 = vpop.f32.mrb[0].mxu0
  %v2591 = vadd.f32 %v2362, %v2590
  %v2592 = vpop.f32.mrb[0].mxu0
  %2593 = vmatprep.mubr.f32.mxu0 0.0
  %v2594 = vand.u32 %v217, 4294901760
  %2595 = vmatmul.mubr.f32.gmra.mrb[0].mxu0 %v2594
  %v2596 = vpop.f32.mrb[0].mxu0
  %v2597 = vadd.f32 %v2370, %v2596
  %v2598 = vpop.f32.mrb[0].mxu0
  %2599 = vmatprep.mubr.f32.mxu0 0.0
  %v2600 = vand.u32 %v218, 4294901760
  %2601 = vmatmul.mubr.f32.gmra.mrb[0].mxu0 %v2600
  %v2602 = vpop.f32.mrb[0].mxu0
  %v2603 = vadd.f32 %v2378, %v2602
  %v2604 = vpop.f32.mrb[0].mxu0
  %2605 = vmatprep.mubr.f32.mxu0 0.0
  %v2606 = vand.u32 %v219, 4294901760
  %2607 = vmatmul.mubr.f32.gmra.mrb[0].mxu0 %v2606
  %v2608 = vpop.f32.mrb[0].mxu0
  %v2609 = vadd.f32 %v2386, %v2608
  %v2610 = vpop.f32.mrb[0].mxu0
  %2611 = vmatprep.mubr.f32.mxu0 0.0
  %v2612 = vand.u32 %v220, 4294901760
  %2613 = vmatmul.mubr.f32.gmra.mrb[0].mxu0 %v2612
  %v2614 = vpop.f32.mrb[0].mxu0
  %v2615 = vadd.f32 %v2394, %v2614
  %v2616 = vpop.f32.mrb[0].mxu0
  %2617 = vmatprep.mubr.f32.mxu0 0.0
  %v2618 = vand.u32 %v221, 4294901760
  %2619 = vmatmul.mubr.f32.gmra.mrb[0].mxu0 %v2618
  %v2620 = vpop.f32.mrb[0].mxu0
  %v2621 = vadd.f32 %v2402, %v2620
  %v2622 = vpop.f32.mrb[0].mxu0
  %2623 = vmatprep.mubr.f32.mxu0 0.0
  %v2624 = vand.u32 %v222, 4294901760
  %2625 = vmatmul.mubr.f32.gmra.mrb[0].mxu0 %v2624
  %v2626 = vpop.f32.mrb[0].mxu0
  %v2627 = vadd.f32 %v2410, %v2626
  %v2628 = vpop.f32.mrb[0].mxu0
  %2629 = vmatprep.mubr.f32.mxu0 0.0
  %v2630 = vand.u32 %v223, 4294901760
  %2631 = vmatmul.mubr.f32.gmra.mrb[0].mxu0 %v2630
  %v2632 = vpop.f32.mrb[0].mxu0
  %v2633 = vadd.f32 %v2418, %v2632
  %v2634 = vpop.f32.mrb[0].mxu0
  %2635 = vmatprep.mubr.f32.mxu0 0.0
  %v2636 = vand.u32 %v224, 4294901760
  %2637 = vmatmul.mubr.f32.gmra.mrb[0].mxu0 %v2636
  %v2638 = vpop.f32.mrb[0].mxu0
  %v2639 = vadd.f32 %v2426, %v2638
  %v2640 = vpop.f32.mrb[0].mxu0
  %2641 = vmatprep.mubr.f32.mxu0 0.0
  %v2642 = vand.u32 %v225, 4294901760
  %2643 = vmatmul.mubr.f32.gmra.mrb[0].mxu0 %v2642
  %v2644 = vpop.f32.mrb[0].mxu0
  %v2645 = vadd.f32 %v2434, %v2644
  %v2646 = vpop.f32.mrb[0].mxu0
  %2647 = vmatprep.mubr.f32.mxu0 0.0
  %v2648 = vand.u32 %v226, 4294901760
  %2649 = vmatmul.mubr.f32.gmra.mrb[0].mxu0 %v2648
  %v2650 = vpop.f32.mrb[0].mxu0
  %v2651 = vadd.f32 %v2442, %v2650
  %v2652 = vpop.f32.mrb[0].mxu0
  %2653 = vdwg.mxu0
  %2654 = vmatprep.subr.mxu0 0.0
  %v2655 = vand.u32 %v1529, 4294901760
  %2656 = vmatpush1.msra.mxu0 %v2655
  %2657 = vmatprep.subr.mxu0 0.0
  %v2658 = vand.u32 %v1530, 4294901760
  %2659 = vmatpush1.msra.mxu0 %v2658
  %2660 = vmatprep.subr.mxu0 0.0
  %v2661 = vand.u32 %v1531, 4294901760
  %2662 = vmatpush1.msra.mxu0 %v2661
  %2663 = vmatprep.subr.mxu0 0.0
  %v2664 = vand.u32 %v1532, 4294901760
  %2665 = vmatpush1.msra.mxu0 %v2664
  %2666 = vmatprep.subr.mxu0 0.0
  %v2667 = vand.u32 %v1533, 4294901760
  %2668 = vmatpush1.msra.mxu0 %v2667
  %2669 = vmatprep.subr.mxu0 0.0
  %v2670 = vand.u32 %v1534, 4294901760
  %2671 = vmatpush1.msra.mxu0 %v2670
  %2672 = vmatprep.subr.mxu0 0.0
  %v2673 = vand.u32 %v1535, 4294901760
  %2674 = vmatpush1.msra.mxu0 %v2673
  %2675 = vmatprep.subr.mxu0 0.0
  %v2676 = vand.u32 %v1536, 4294901760
  %2677 = vmatpush1.msra.mxu0 %v2676
  %2678 = vmatprep.subr.mxu0 0.0
  %v2679 = vand.u32 %v1537, 4294901760
  %2680 = vmatpush1.msra.mxu0 %v2679
  %2681 = vmatprep.subr.mxu0 0.0
  %v2682 = vand.u32 %v1538, 4294901760
  %2683 = vmatpush1.msra.mxu0 %v2682
  %2684 = vmatprep.subr.mxu0 0.0
  %v2685 = vand.u32 %v1539, 4294901760
  %2686 = vmatpush1.msra.mxu0 %v2685
  %2687 = vmatprep.subr.mxu0 0.0
  %v2688 = vand.u32 %v1540, 4294901760
  %2689 = vmatpush1.msra.mxu0 %v2688
  %2690 = vmatprep.subr.mxu0 0.0
  %v2691 = vand.u32 %v1541, 4294901760
  %2692 = vmatpush1.msra.mxu0 %v2691
  %2693 = vmatprep.subr.mxu0 0.0
  %v2694 = vand.u32 %v1542, 4294901760
  %2695 = vmatpush1.msra.mxu0 %v2694
  %2696 = vmatprep.subr.mxu0 0.0
  %v2697 = vand.u32 %v1543, 4294901760
  %2698 = vmatpush1.msra.mxu0 %v2697
  %2699 = vmatprep.subr.mxu0 0.0
  %v2700 = vand.u32 %v1544, 4294901760
  %2701 = vmatpush1.msra.mxu0 %v2700
  %2702 = vmatprep.subr.mxu0 0.0
  %2703 = vmatpush1.msra.mxu0 0.0
  %2704 = vmatprep.subr.mxu0 0.0
  %2705 = vmatpush1.msra.mxu0 0.0
  %2706 = vmatprep.subr.mxu0 0.0
  %2707 = vmatpush1.msra.mxu0 0.0
  %2708 = vmatprep.subr.mxu0 0.0
  %2709 = vmatpush1.msra.mxu0 0.0
  %2710 = vmatprep.subr.mxu0 0.0
  %2711 = vmatpush1.msra.mxu0 0.0
  %2712 = vmatprep.subr.mxu0 0.0
  %2713 = vmatpush1.msra.mxu0 0.0
  %2714 = vmatprep.subr.mxu0 0.0
  %2715 = vmatpush1.msra.mxu0 0.0
  %2716 = vmatprep.subr.mxu0 0.0
  %2717 = vmatpush1.msra.mxu0 0.0
  %2718 = vmatprep.subr.mxu0 0.0
  %2719 = vmatpush1.msra.mxu0 0.0
  %2720 = vmatprep.subr.mxu0 0.0
  %2721 = vmatpush1.msra.mxu0 0.0
  %2722 = vmatprep.subr.mxu0 0.0
  %2723 = vmatpush1.msra.mxu0 0.0
  %2724 = vmatprep.subr.mxu0 0.0
  %2725 = vmatpush1.msra.mxu0 0.0
  %2726 = vmatprep.subr.mxu0 0.0
  %2727 = vmatpush1.msra.mxu0 0.0
  %2728 = vmatprep.subr.mxu0 0.0
  %2729 = vmatpush1.msra.mxu0 0.0
  %2730 = vmatprep.subr.mxu0 0.0
  %2731 = vmatpush1.msra.mxu0 0.0
  %2732 = vmatprep.subr.mxu0 0.0
  %2733 = vmatpush1.msra.mxu0 0.0
  %2734 = vmatprep.mubr.f32.mxu0 0.0
  %v2735 = vand.u32 %v211, 4294901760
  %2736 = vmatmul.mubr.f32.gmra.mrb[0].mxu0 %v2735
  %v2737 = vpop.f32.mrb[0].mxu0
  %v2738 = vadd.f32 %v2561, %v2737
  %v2739 = vpop.f32.mrb[0].mxu0
  %2740 = vmatprep.mubr.f32.mxu0 0.0
  %v2741 = vand.u32 %v212, 4294901760
  %2742 = vmatmul.mubr.f32.gmra.mrb[0].mxu0 %v2741
  %v2743 = vpop.f32.mrb[0].mxu0
  %v2744 = vadd.f32 %v2567, %v2743
  %v2745 = vpop.f32.mrb[0].mxu0
  %2746 = vmatprep.mubr.f32.mxu0 0.0
  %v2747 = vand.u32 %v213, 4294901760
  %2748 = vmatmul.mubr.f32.gmra.mrb[0].mxu0 %v2747
  %v2749 = vpop.f32.mrb[0].mxu0
  %v2750 = vadd.f32 %v2573, %v2749
  %v2751 = vpop.f32.mrb[0].mxu0
  %2752 = vmatprep.mubr.f32.mxu0 0.0
  %v2753 = vand.u32 %v214, 4294901760
  %2754 = vmatmul.mubr.f32.gmra.mrb[0].mxu0 %v2753
  %v2755 = vpop.f32.mrb[0].mxu0
  %v2756 = vadd.f32 %v2579, %v2755
  %v2757 = vpop.f32.mrb[0].mxu0
  %2758 = vmatprep.mubr.f32.mxu0 0.0
  %v2759 = vand.u32 %v215, 4294901760
  %2760 = vmatmul.mubr.f32.gmra.mrb[0].mxu0 %v2759
  %v2761 = vpop.f32.mrb[0].mxu0
  %v2762 = vadd.f32 %v2585, %v2761
  %v2763 = vpop.f32.mrb[0].mxu0
  %2764 = vmatprep.mubr.f32.mxu0 0.0
  %v2765 = vand.u32 %v216, 4294901760
  %2766 = vmatmul.mubr.f32.gmra.mrb[0].mxu0 %v2765
  %v2767 = vpop.f32.mrb[0].mxu0
  %v2768 = vadd.f32 %v2591, %v2767
  %v2769 = vpop.f32.mrb[0].mxu0
  %2770 = vmatprep.mubr.f32.mxu0 0.0
  %v2771 = vand.u32 %v217, 4294901760
  %2772 = vmatmul.mubr.f32.gmra.mrb[0].mxu0 %v2771
  %v2773 = vpop.f32.mrb[0].mxu0
  %v2774 = vadd.f32 %v2597, %v2773
  %v2775 = vpop.f32.mrb[0].mxu0
  %2776 = vmatprep.mubr.f32.mxu0 0.0
  %v2777 = vand.u32 %v218, 4294901760
  %2778 = vmatmul.mubr.f32.gmra.mrb[0].mxu0 %v2777
  %v2779 = vpop.f32.mrb[0].mxu0
  %v2780 = vadd.f32 %v2603, %v2779
  %v2781 = vpop.f32.mrb[0].mxu0
  %2782 = vmatprep.mubr.f32.mxu0 0.0
  %v2783 = vand.u32 %v219, 4294901760
  %2784 = vmatmul.mubr.f32.gmra.mrb[0].mxu0 %v2783
  %v2785 = vpop.f32.mrb[0].mxu0
  %v2786 = vadd.f32 %v2609, %v2785
  %v2787 = vpop.f32.mrb[0].mxu0
  %2788 = vmatprep.mubr.f32.mxu0 0.0
  %v2789 = vand.u32 %v220, 4294901760
  %2790 = vmatmul.mubr.f32.gmra.mrb[0].mxu0 %v2789
  %v2791 = vpop.f32.mrb[0].mxu0
  %v2792 = vadd.f32 %v2615, %v2791
  %v2793 = vpop.f32.mrb[0].mxu0
  %2794 = vmatprep.mubr.f32.mxu0 0.0
  %v2795 = vand.u32 %v221, 4294901760
  %2796 = vmatmul.mubr.f32.gmra.mrb[0].mxu0 %v2795
  %v2797 = vpop.f32.mrb[0].mxu0
  %v2798 = vadd.f32 %v2621, %v2797
  %v2799 = vpop.f32.mrb[0].mxu0
  %2800 = vmatprep.mubr.f32.mxu0 0.0
  %v2801 = vand.u32 %v222, 4294901760
  %2802 = vmatmul.mubr.f32.gmra.mrb[0].mxu0 %v2801
  %v2803 = vpop.f32.mrb[0].mxu0
  %v2804 = vadd.f32 %v2627, %v2803
  %v2805 = vpop.f32.mrb[0].mxu0
  %2806 = vmatprep.mubr.f32.mxu0 0.0
  %v2807 = vand.u32 %v223, 4294901760
  %2808 = vmatmul.mubr.f32.gmra.mrb[0].mxu0 %v2807
  %v2809 = vpop.f32.mrb[0].mxu0
  %v2810 = vadd.f32 %v2633, %v2809
  %v2811 = vpop.f32.mrb[0].mxu0
  %2812 = vmatprep.mubr.f32.mxu0 0.0
  %v2813 = vand.u32 %v224, 4294901760
  %2814 = vmatmul.mubr.f32.gmra.mrb[0].mxu0 %v2813
  %v2815 = vpop.f32.mrb[0].mxu0
  %v2816 = vadd.f32 %v2639, %v2815
  %v2817 = vpop.f32.mrb[0].mxu0
  %2818 = vmatprep.mubr.f32.mxu0 0.0
  %v2819 = vand.u32 %v225, 4294901760
  %2820 = vmatmul.mubr.f32.gmra.mrb[0].mxu0 %v2819
  %v2821 = vpop.f32.mrb[0].mxu0
  %v2822 = vadd.f32 %v2645, %v2821
  %v2823 = vpop.f32.mrb[0].mxu0
  %2824 = vmatprep.mubr.f32.mxu0 0.0
  %v2825 = vand.u32 %v226, 4294901760
  %2826 = vmatmul.mubr.f32.gmra.mrb[0].mxu0 %v2825
  %v2827 = vpop.f32.mrb[0].mxu0
  %v2828 = vadd.f32 %v2651, %v2827
  %v2829 = vpop.f32.mrb[0].mxu0
  %2830 = vdwg.mxu0
  %vm2831 = vcmask 261120
  %2832 = vst.msk [vmem:[%s4] sm:$0xff] %vm2831, %v1436
  %2833 = vst.msk [vmem:[%s4 + $0x8] sm:$0xff] %vm2831, %v1442
  %2834 = vst.msk [vmem:[%s4 + $0x10] sm:$0xff] %vm2831, %v1448
  %2835 = vst.msk [vmem:[%s4 + $0x18] sm:$0xff] %vm2831, %v1454
  %2836 = vst.msk [vmem:[%s4 + $0x20] sm:$0xff] %vm2831, %v1460
  %2837 = vst.msk [vmem:[%s4 + $0x28] sm:$0xff] %vm2831, %v1466
  %2838 = vst.msk [vmem:[%s4 + $0x30] sm:$0xff] %vm2831, %v1472
  %2839 = vst.msk [vmem:[%s4 + $0x38] sm:$0xff] %vm2831, %v1478
  %2840 = vst.msk [vmem:[%s4 + $0x40] sm:$0xff] %vm2831, %v1484
  %2841 = vst.msk [vmem:[%s4 + $0x48] sm:$0xff] %vm2831, %v1490
  %2842 = vst.msk [vmem:[%s4 + $0x50] sm:$0xff] %vm2831, %v1496
  %2843 = vst.msk [vmem:[%s4 + $0x58] sm:$0xff] %vm2831, %v1502
  %2844 = vst.msk [vmem:[%s4 + $0x60] sm:$0xff] %vm2831, %v1508
  %2845 = vst.msk [vmem:[%s4 + $0x68] sm:$0xff] %vm2831, %v1514
  %2846 = vst.msk [vmem:[%s4 + $0x70] sm:$0xff] %vm2831, %v1520
  %2847 = vst.msk [vmem:[%s4 + $0x78] sm:$0xff] %vm2831, %v1526
  %2848 = vst.msk [vmem:[%s5] sm:$0xff] %vm2831, %v2738
  %2849 = vst.msk [vmem:[%s5 + $0x8] sm:$0xff] %vm2831, %v2744
  %2850 = vst.msk [vmem:[%s5 + $0x10] sm:$0xff] %vm2831, %v2750
  %2851 = vst.msk [vmem:[%s5 + $0x18] sm:$0xff] %vm2831, %v2756
  %2852 = vst.msk [vmem:[%s5 + $0x20] sm:$0xff] %vm2831, %v2762
  %2853 = vst.msk [vmem:[%s5 + $0x28] sm:$0xff] %vm2831, %v2768
  %2854 = vst.msk [vmem:[%s5 + $0x30] sm:$0xff] %vm2831, %v2774
  %2855 = vst.msk [vmem:[%s5 + $0x38] sm:$0xff] %vm2831, %v2780
  %2856 = vst.msk [vmem:[%s5 + $0x40] sm:$0xff] %vm2831, %v2786
  %2857 = vst.msk [vmem:[%s5 + $0x48] sm:$0xff] %vm2831, %v2792
  %2858 = vst.msk [vmem:[%s5 + $0x50] sm:$0xff] %vm2831, %v2798
  %2859 = vst.msk [vmem:[%s5 + $0x58] sm:$0xff] %vm2831, %v2804
  %2860 = vst.msk [vmem:[%s5 + $0x60] sm:$0xff] %vm2831, %v2810
  %2861 = vst.msk [vmem:[%s5 + $0x68] sm:$0xff] %vm2831, %v2816
  %2862 = vst.msk [vmem:[%s5 + $0x70] sm:$0xff] %vm2831, %v2822
  %2863 = vst.msk [vmem:[%s5 + $0x78] sm:$0xff] %vm2831, %v2828
  %v2864 = vmul.f32 %v1436, %v2738
  %v2865 = vmul.f32 %v1442, %v2744
  %v2866 = vmul.f32 %v1448, %v2750
  %v2867 = vmul.f32 %v1454, %v2756
  %v2868 = vmul.f32 %v1460, %v2762
  %v2869 = vmul.f32 %v1466, %v2768
  %v2870 = vmul.f32 %v1472, %v2774
  %v2871 = vmul.f32 %v1478, %v2780
  %v2872 = vmul.f32 %v1484, %v2786
  %v2873 = vmul.f32 %v1490, %v2792
  %v2874 = vmul.f32 %v1496, %v2798
  %v2875 = vmul.f32 %v1502, %v2804
  %v2876 = vmul.f32 %v1508, %v2810
  %v2877 = vmul.f32 %v1514, %v2816
  %v2878 = vmul.f32 %v1520, %v2822
  %v2879 = vmul.f32 %v1526, %v2828
  %v2880 = vsel %vm2831, %v2864, 0.0
  %2881 = vadd.xlane.f32.xlu0 %v2880
  %v2882 = vpop.xlane.xlu0 %2881
  %v2883 = vsel %vm2831, %v2865, 0.0
  %2884 = vadd.xlane.f32.xlu0 %v2883
  %v2885 = vpop.xlane.xlu0 %2884
  %v2886 = vsel %vm2831, %v2866, 0.0
  %2887 = vadd.xlane.f32.xlu0 %v2886
  %v2888 = vpop.xlane.xlu0 %2887
  %v2889 = vsel %vm2831, %v2867, 0.0
  %2890 = vadd.xlane.f32.xlu0 %v2889
  %v2891 = vpop.xlane.xlu0 %2890
  %v2892 = vsel %vm2831, %v2868, 0.0
  %2893 = vadd.xlane.f32.xlu0 %v2892
  %v2894 = vpop.xlane.xlu0 %2893
  %v2895 = vsel %vm2831, %v2869, 0.0
  %2896 = vadd.xlane.f32.xlu0 %v2895
  %v2897 = vpop.xlane.xlu0 %2896
  %v2898 = vsel %vm2831, %v2870, 0.0
  %2899 = vadd.xlane.f32.xlu0 %v2898
  %v2900 = vpop.xlane.xlu0 %2899
  %v2901 = vsel %vm2831, %v2871, 0.0
  %2902 = vadd.xlane.f32.xlu0 %v2901
  %v2903 = vpop.xlane.xlu0 %2902
  %v2904 = vsel %vm2831, %v2872, 0.0
  %2905 = vadd.xlane.f32.xlu0 %v2904
  %v2906 = vpop.xlane.xlu0 %2905
  %v2907 = vsel %vm2831, %v2873, 0.0
  %2908 = vadd.xlane.f32.xlu0 %v2907
  %v2909 = vpop.xlane.xlu0 %2908
  %v2910 = vsel %vm2831, %v2874, 0.0
  %2911 = vadd.xlane.f32.xlu0 %v2910
  %v2912 = vpop.xlane.xlu0 %2911
  %v2913 = vsel %vm2831, %v2875, 0.0
  %2914 = vadd.xlane.f32.xlu0 %v2913
  %v2915 = vpop.xlane.xlu0 %2914
  %v2916 = vsel %vm2831, %v2876, 0.0
  %2917 = vadd.xlane.f32.xlu0 %v2916
  %v2918 = vpop.xlane.xlu0 %2917
  %v2919 = vsel %vm2831, %v2877, 0.0
  %2920 = vadd.xlane.f32.xlu0 %v2919
  %v2921 = vpop.xlane.xlu0 %2920
  %v2922 = vsel %vm2831, %v2878, 0.0
  %2923 = vadd.xlane.f32.xlu0 %v2922
  %v2924 = vpop.xlane.xlu0 %2923
  %v2925 = vsel %vm2831, %v2879, 0.0
  %2926 = vadd.xlane.f32.xlu0 %v2925
  %v2927 = vpop.xlane.xlu0 %2926
  %vm2928 = vcmask 7168
  %2929 = vst.msk [vmem:[%s3] sm:$0xff] %vm2928, %v2882
  %2930 = vst.msk [vmem:[%s3 + $0x8] sm:$0xff] %vm2928, %v2885
  %2931 = vst.msk [vmem:[%s3 + $0x10] sm:$0xff] %vm2928, %v2888
  %2932 = vst.msk [vmem:[%s3 + $0x18] sm:$0xff] %vm2928, %v2891
  %2933 = vst.msk [vmem:[%s3 + $0x20] sm:$0xff] %vm2928, %v2894
  %2934 = vst.msk [vmem:[%s3 + $0x28] sm:$0xff] %vm2928, %v2897
  %2935 = vst.msk [vmem:[%s3 + $0x30] sm:$0xff] %vm2928, %v2900
  %2936 = vst.msk [vmem:[%s3 + $0x38] sm:$0xff] %vm2928, %v2903
  %2937 = vst.msk [vmem:[%s3 + $0x40] sm:$0xff] %vm2928, %v2906
  %2938 = vst.msk [vmem:[%s3 + $0x48] sm:$0xff] %vm2928, %v2909
  %2939 = vst.msk [vmem:[%s3 + $0x50] sm:$0xff] %vm2928, %v2912
  %2940 = vst.msk [vmem:[%s3 + $0x58] sm:$0xff] %vm2928, %v2915
  %2941 = vst.msk [vmem:[%s3 + $0x60] sm:$0xff] %vm2928, %v2918
  %2942 = vst.msk [vmem:[%s3 + $0x68] sm:$0xff] %vm2928, %v2921
  %2943 = vst.msk [vmem:[%s3 + $0x70] sm:$0xff] %vm2928, %v2924
  %2944 = vst.msk [vmem:[%s3 + $0x78] sm:$0xff] %vm2928, %v2927
  // Predicated region
  $region14: #{mf_forward.1} parent=0 // pred_check
    _
  $region15: #{mf_forward.1} parent=0 // pred_check_branch
    %2946 = sbr.rel (0) target = $region17
  $region16: #{mf_forward.1} parent=0 // pred_region
    _
  $region17: #{mf_forward.1} parent=0 // pred_fallthru
    _
  // Predicated region
  $region18: #{mf_forward.1} parent=0 // pred_check
    _
  $region19: #{mf_forward.1} parent=0 // pred_check_branch
    %2948 = sbr.rel (0) target = $region21
  $region20: #{mf_forward.1} parent=0 // pred_region
    _
  $region21: #{mf_forward.1} parent=0 // pred_fallthru
    _
  // Predicated region
  $region22: #{mf_forward.1} parent=0 // pred_check
    _
  $region23: #{mf_forward.1} parent=0 // pred_check_branch
    %2950 = sbr.rel (0) target = $region25
  $region24: #{mf_forward.1} parent=0 // pred_region
    _
  $region25: #{mf_forward.1} parent=0 // pred_fallthru
    _
  // Predicated region
  $region26: #{mf_forward.1} parent=0 // pred_check
    _
  $region27: #{mf_forward.1} parent=0 // pred_check_branch
    %2952 = sbr.rel (0) target = $region29
  $region28: #{mf_forward.1} parent=0 // pred_region
    _
  $region29: #{mf_forward.1} parent=0 // pred_fallthru
    _
  // Predicated region
  $region30: #{mf_forward.1} parent=0 // pred_check
    _
  $region31: #{mf_forward.1} parent=0 // pred_check_branch
    %2954 = sbr.rel (0) target = $region33
  $region32: #{mf_forward.1} parent=0 // pred_region
    _
  $region33: #{mf_forward.1} parent=0 // pred_fallthru
    _
  // Predicated region
  $region34: #{mf_forward.1} parent=0 // pred_check
    _
  $region35: #{mf_forward.1} parent=0 // pred_check_branch
    %2956 = sbr.rel (0) target = $region37
  $region36: #{mf_forward.1} parent=0 // pred_region
    _
  $region37: #{mf_forward.1} parent=0 // pred_fallthru
    _

</llo_original>
